<compile_context>
chip_gen: v5e
topology: v5e:2x2
jax: 0.10.0
libtpu: 0.0.40
codegen_flags: <defaults>
</compile_context>

<pallas_src>
import functools
import math

import jax
import jax.numpy as jnp
from jax import lax
from jax.experimental import pallas as pl
from jax.experimental.pallas import tpu as pltpu

LN_EPS = 1e-5        # torch.nn.LayerNorm default
NEG_INF = -1e30      # finite "minus infinity": avoids NaN when a row is fully masked


def _layernorm(z, gamma, beta):
    # LayerNorm over the last dim, biased variance (matches torch). f32 math.
    mean = jnp.mean(z, axis=-1, keepdims=True)
    var = jnp.mean((z - mean) ** 2, axis=-1, keepdims=True)
    return (z - mean) * lax.rsqrt(var + LN_EPS) * gamma + beta


def encoder_block_kernel(
    # scalar-prefetch ref (SMEM)
    valid_lens_ref,                       # (B,) int32
    # inputs
    x_ref,                                # (B_TILE*S, H) f32
    wq_ref, wk_ref, wv_ref,               # (NH, H, dh) bf16
    wo_ref,                               # (NH, dh, H) bf16
    g1_ref, b1_ref,                       # (1, H) f32
    w1_ref, w2_ref,                       # (H, F), (F, H) bf16
    g2_ref, b2_ref,                       # (1, H) f32
    # output
    out_ref,                              # (B_TILE*S, H) f32
    # scratch
    attn_ref,                             # VMEM (B_TILE*S, H) f32
    *, num_heads: int, batch_tile: int, seq_len: int,
):
    g = pl.program_id(0)
    S = seq_len
    dh = wq_ref.shape[2]
    scale = 1.0 / math.sqrt(dh)           # torch scales by sqrt(per-head dim)

    x = x_ref[...].astype(jnp.float32)            # residual / LayerNorm path (f32)
    x_bf = x_ref[...].astype(jnp.bfloat16)        # MXU operand path (bf16)

    # Per-sub-batch additive key masks, hoisted out of the head loop.
    key_idx = lax.broadcasted_iota(jnp.int32, (S, S), 1)
    masks = []
    for bi in range(batch_tile):
        vl = valid_lens_ref[g * batch_tile + bi]
        masks.append(jnp.where(key_idx >= vl,
                               jnp.float32(NEG_INF), jnp.float32(0.0)))

    # ---- multi-head self-attention, accumulated into a (BT*S, H) f32 scratch ---
    attn_ref[...] = jnp.zeros_like(attn_ref)
    for h in range(num_heads):                    # static unrolled loop over heads
        wq_h = wq_ref[h]                          # (H, dh) bf16 — leading-axis index
        wk_h = wk_ref[h]
        wv_h = wv_ref[h]
        wo_h = wo_ref[h]                          # (dh, H) bf16

        # QKV projections fused over all batch rows in this block: (BT*S, dh)
        qh = jnp.dot(x_bf, wq_h, preferred_element_type=jnp.float32)
        kh = jnp.dot(x_bf, wk_h, preferred_element_type=jnp.float32)
        vh = jnp.dot(x_bf, wv_h, preferred_element_type=jnp.float32)

        for bi in range(batch_tile):              # per-batch attention (block-diag)
            rows = slice(bi * S, (bi + 1) * S)    # static sublane slice
            q_b = qh[rows, :].astype(jnp.bfloat16)
            k_b = kh[rows, :].astype(jnp.bfloat16)
            v_b = vh[rows, :].astype(jnp.bfloat16)

            # scores: contract last-vs-last — no explicit K transpose
            s = lax.dot_general(q_b, k_b, (((1,), (1,)), ((), ())),
                                preferred_element_type=jnp.float32)
            s = s * scale + masks[bi]             # (S, S) f32

            s_max = jnp.max(s, axis=-1, keepdims=True)
            e = jnp.exp(s - s_max)
            denom = jnp.sum(e, axis=-1, keepdims=True)
            p = e * pl.reciprocal(denom, approx=True)          # softmax (f32)

            ctx = jnp.dot(p.astype(jnp.bfloat16), v_b,
                          preferred_element_type=jnp.float32)  # (S, dh)
            contrib = jnp.dot(ctx.astype(jnp.bfloat16), wo_h,
                              preferred_element_type=jnp.float32)  # (S, H)
            attn_ref[rows, :] = attn_ref[rows, :] + contrib

    # ---- Add & Norm 1 (f32) ----
    y = _layernorm(x + attn_ref[...], g1_ref[...], b1_ref[...])

    # ---- position-wise FFN (bf16 MXU operands, f32 accumulation) ----
    hdn = jnp.maximum(
        jnp.dot(y.astype(jnp.bfloat16), w1_ref[...],
                preferred_element_type=jnp.float32), 0.0)
    ffn = jnp.dot(hdn.astype(jnp.bfloat16), w2_ref[...],
                  preferred_element_type=jnp.float32)

    # ---- Add & Norm 2 ----
    out = _layernorm(y + ffn, g2_ref[...], b2_ref[...])
    out_ref[...] = out.astype(out_ref.dtype)


def encoder_block_forward(x, valid_lens, params, *, num_heads, batch_tile=None):
    """x: (B, S, H) float32, valid_lens: (B,) int32.  Returns (out, valid_lens)."""
    B, S, H = x.shape
    wq, wk, wv, wo, g1, b1, w1, w2, g2, b2 = params
    assert H % num_heads == 0
    dh = H // num_heads
    F = w1.shape[1]          # FFN hidden width (== H for this module)

    # Choose batch tile: aim for a large fused MXU M dimension per grid step.
    if batch_tile is None:
        batch_tile = max(1, min(B, 256 // max(S, 1)))
    while B % batch_tile != 0:
        batch_tile -= 1
    grid = (B // batch_tile,)
    rows = batch_tile * S

    # Head-major weight layouts + bf16 MXU operands (done once, outside kernel).
    # wq_h[h] == wq[:, h*dh:(h+1)*dh];  wo_h[h] == wo[h*dh:(h+1)*dh, :]
    wq_h = wq.reshape(H, num_heads, dh).transpose(1, 0, 2).astype(jnp.bfloat16)
    wk_h = wk.reshape(H, num_heads, dh).transpose(1, 0, 2).astype(jnp.bfloat16)
    wv_h = wv.reshape(H, num_heads, dh).transpose(1, 0, 2).astype(jnp.bfloat16)
    wo_h = wo.reshape(num_heads, dh, H).astype(jnp.bfloat16)
    w1_b = w1.astype(jnp.bfloat16)
    w2_b = w2.astype(jnp.bfloat16)
    g1 = g1.astype(jnp.float32); b1 = b1.astype(jnp.float32)
    g2 = g2.astype(jnp.float32); b2 = b2.astype(jnp.float32)

    x2d = x.reshape(B * S, H)      # fused (batch*seq, hidden) slab; lane-dense when H%128==0

    x_spec = pl.BlockSpec((rows, H), lambda g, vl: (g, 0))
    wqkv_spec = pl.BlockSpec((num_heads, H, dh), lambda g, vl: (0, 0, 0))
    wo_spec = pl.BlockSpec((num_heads, dh, H), lambda g, vl: (0, 0, 0))
    vec_spec = pl.BlockSpec((1, H), lambda g, vl: (0, 0))
    w1_spec = pl.BlockSpec((H, F), lambda g, vl: (0, 0))
    w2_spec = pl.BlockSpec((F, H), lambda g, vl: (0, 0))

    flops = (2 * B * S * H * H * 4            # QKV + Wo projections
             + 4 * B * num_heads * S * S * dh  # scores + context
             + 4 * B * S * H * F)              # FFN (two matmuls)
    transcendentals = B * num_heads * S * S    # exp in softmax
    bytes_accessed = (4 * B * S * H * 2                    # x in, out
                      + 2 * (4 * H * H + 2 * H * F)        # bf16 weights
                      + 4 * 4 * H + 4 * B)                 # LN params, valid_lens
    cost = pl.CostEstimate(flops=flops, transcendentals=transcendentals,
                           bytes_accessed=bytes_accessed)

    out2d = pl.pallas_call(
        functools.partial(encoder_block_kernel, num_heads=num_heads,
                          batch_tile=batch_tile, seq_len=S),
        out_shape=jax.ShapeDtypeStruct((B * S, H), x.dtype),
        grid_spec=pltpu.PrefetchScalarGridSpec(
            num_scalar_prefetch=1,
            grid=grid,
            in_specs=[
                x_spec,
                wqkv_spec, wqkv_spec, wqkv_spec,   # Wq, Wk, Wv (head-major)
                wo_spec,                           # Wo (head-major)
                vec_spec, vec_spec,                # gamma1, beta1
                w1_spec, w2_spec,                  # FFN W1, W2
                vec_spec, vec_spec,                # gamma2, beta2
            ],
            out_specs=x_spec,
            scratch_shapes=[pltpu.VMEM((rows, H), jnp.float32)],   # MHA accumulator
        ),
        compiler_params=pltpu.CompilerParams(
            dimension_semantics=("parallel",),
            vmem_limit_bytes=48 * 1024 * 1024,
        ),
        cost_estimate=cost,
    )(valid_lens, x2d, wq_h, wk_h, wv_h, wo_h, g1, b1, w1_b, w2_b, g2, b2)
    return out2d.reshape(B, S, H), valid_lens


def make_params(key, hidden, dtype=jnp.float32):
    """Deterministic synthetic parameters (shapes match EncoderBlock.__init__)."""
    ks = jax.random.split(key, 6)
    scale = 1.0 / math.sqrt(hidden)
    wq = jax.random.normal(ks[0], (hidden, hidden), dtype) * scale
    wk = jax.random.normal(ks[1], (hidden, hidden), dtype) * scale
    wv = jax.random.normal(ks[2], (hidden, hidden), dtype) * scale
    wo = jax.random.normal(ks[3], (hidden, hidden), dtype) * scale
    w1 = jax.random.normal(ks[4], (hidden, hidden), dtype) * scale   # PositionwiseFFN layer 1
    w2 = jax.random.normal(ks[5], (hidden, hidden), dtype) * scale   # PositionwiseFFN layer 2
    g1 = jnp.ones((1, hidden), dtype)   # LayerNorm 1 weight
    b1 = jnp.zeros((1, hidden), dtype)  # LayerNorm 1 bias
    g2 = jnp.ones((1, hidden), dtype)   # LayerNorm 2 weight
    b2 = jnp.zeros((1, hidden), dtype)  # LayerNorm 2 bias
    return (wq, wk, wv, wo, g1, b1, w1, w2, g2, b2)


def encoder_block_reference(x, valid_lens, params, *, num_heads):
    """Pure-JAX reference mirroring the PyTorch forward (dropout = identity),
    using the same bf16-operand / f32-accumulate matmul precision as the kernel."""
    wq, wk, wv, wo, g1, b1, w1, w2, g2, b2 = params
    B, S, H = x.shape
    dh = H // num_heads
    bf = jnp.bfloat16

    def ln(z, g, b):
        m = z.mean(-1, keepdims=True)
        v = ((z - m) ** 2).mean(-1, keepdims=True)
        return (z - m) / jnp.sqrt(v + LN_EPS) * g + b

    def proj(t, w):
        return jnp.einsum('bsh,hd->bsd', t.astype(bf), w.astype(bf),
                          preferred_element_type=jnp.float32)

    def split(t):
        return t.reshape(B, S, num_heads, dh).transpose(0, 2, 1, 3)  # (B, nh, S, dh)

    q, k, v = split(proj(x, wq)), split(proj(x, wk)), split(proj(x, wv))
    s = jnp.einsum('bhqd,bhkd->bhqk', q.astype(bf), k.astype(bf),
                   preferred_element_type=jnp.float32) / math.sqrt(dh)
    key_idx = jnp.arange(S)[None, None, None, :]
    s = jnp.where(key_idx >= valid_lens[:, None, None, None], NEG_INF, s)
    w = jax.nn.softmax(s, axis=-1)
    ctx = jnp.einsum('bhqk,bhkd->bhqd', w.astype(bf), v.astype(bf),
                     preferred_element_type=jnp.float32)
    ctx = ctx.transpose(0, 2, 1, 3).reshape(B, S, H)
    y = ln(x + proj(ctx, wo), g1, b1)
    f = proj(jax.nn.relu(proj(y, w1)), w2)
    return ln(y + f, g2, b2), valid_lens


if __name__ == "__main__":
    B, S, H, NH = 2, 8, 32, 4

    key = jax.random.PRNGKey(0)
    kx, kp = jax.random.split(key)
    x = jax.random.normal(kx, (B, S, H), jnp.float32)
    valid_lens = jnp.array([5, 8], dtype=jnp.int32)
    params = make_params(kp, H)

    out, vl_out = encoder_block_forward(x, valid_lens, params, num_heads=NH)
    out = jax.block_until_ready(out)

    ref, _ = encoder_block_reference(x, valid_lens, params, num_heads=NH)
    assert out.shape == (B, S, H)
    assert jnp.all(jnp.isfinite(out)), "non-finite values in Pallas output"
    assert jnp.allclose(out, ref, atol=2e-2, rtol=2e-2), \
        "Pallas output mismatch vs bf16-matched reference"

    # TODO(synk): dropout layers are treated as identity (inference semantics);
    # training-mode stochastic dropout is intentionally not reproduced.
    print("KERNEL_OK")
</pallas_src>

<mosaic_0001>
module attributes {stable_mosaic.version = 11 : i64} {
  func.func @encoder_block_kernel(%arg0: i32, %arg1: memref<2xi32, #tpu.memory_space<smem>>, %arg2: memref<16x32xf32, #tpu.memory_space<vmem>>, %arg3: memref<4x32x8xbf16, #tpu.memory_space<vmem>>, %arg4: memref<4x32x8xbf16, #tpu.memory_space<vmem>>, %arg5: memref<4x32x8xbf16, #tpu.memory_space<vmem>>, %arg6: memref<4x8x32xbf16, #tpu.memory_space<vmem>>, %arg7: memref<1x32xf32, #tpu.memory_space<vmem>>, %arg8: memref<1x32xf32, #tpu.memory_space<vmem>>, %arg9: memref<32x32xbf16, #tpu.memory_space<vmem>>, %arg10: memref<32x32xbf16, #tpu.memory_space<vmem>>, %arg11: memref<1x32xf32, #tpu.memory_space<vmem>>, %arg12: memref<1x32xf32, #tpu.memory_space<vmem>>, %arg13: memref<16x32xf32, #tpu.memory_space<vmem>>, %arg14: memref<16x32xf32, #tpu.memory_space<vmem>>) attributes {dimension_semantics = [#tpu.dimension_semantics<parallel>], iteration_bounds = array<i64: 1>, scalar_prefetch = 1 : i64, scratch_operands = 1 : i64, tpu.core_type = #tpu.core_type<tc>, window_params = [{transform_indices = @transform_0, window_bounds = array<i64: 16, 32>}, {pipeline_mode = #tpu.pipeline_mode<synchronous>, transform_indices = @transform_1, window_bounds = array<i64: 4, 32, 8>}, {pipeline_mode = #tpu.pipeline_mode<synchronous>, transform_indices = @transform_2, window_bounds = array<i64: 4, 32, 8>}, {pipeline_mode = #tpu.pipeline_mode<synchronous>, transform_indices = @transform_3, window_bounds = array<i64: 4, 32, 8>}, {pipeline_mode = #tpu.pipeline_mode<synchronous>, transform_indices = @transform_4, window_bounds = array<i64: 4, 8, 32>}, {pipeline_mode = #tpu.pipeline_mode<synchronous>, transform_indices = @transform_5, window_bounds = array<i64: 1, 32>}, {pipeline_mode = #tpu.pipeline_mode<synchronous>, transform_indices = @transform_6, window_bounds = array<i64: 1, 32>}, {pipeline_mode = #tpu.pipeline_mode<synchronous>, transform_indices = @transform_7, window_bounds = array<i64: 32, 32>}, {pipeline_mode = #tpu.pipeline_mode<synchronous>, transform_indices = @transform_8, window_bounds = array<i64: 32, 32>}, {pipeline_mode = #tpu.pipeline_mode<synchronous>, transform_indices = @transform_9, window_bounds = array<i64: 1, 32>}, {pipeline_mode = #tpu.pipeline_mode<synchronous>, transform_indices = @transform_10, window_bounds = array<i64: 1, 32>}, {transform_indices = @transform_11, window_bounds = array<i64: 16, 32>}]} {
    %c0 = arith.constant 0 : index
    %c0_0 = arith.constant 0 : index
    %0 = vector.load %arg2[%c0, %c0_0] : memref<16x32xf32, #tpu.memory_space<vmem>>, vector<16x32xf32>
    %c0_1 = arith.constant 0 : index
    %c0_2 = arith.constant 0 : index
    %1 = vector.load %arg2[%c0_1, %c0_2] : memref<16x32xf32, #tpu.memory_space<vmem>>, vector<16x32xf32>
    %2 = arith.truncf %1 : vector<16x32xf32> to vector<16x32xbf16>
    %3 = tpu.iota {dimensions = array<i32: 1>} : vector<8x8xi32>
    %c2_i32 = arith.constant 2 : i32
    %4 = arith.muli %arg0, %c2_i32 : i32
    %c0_i32 = arith.constant 0 : i32
    %5 = arith.addi %4, %c0_i32 : i32
    %6 = arith.index_cast %5 : i32 to index
    %7 = memref.load %arg1[%6] : memref<2xi32, #tpu.memory_space<smem>>
    %8 = vector.broadcast %7 : i32 to vector<8x8xi32>
    %9 = arith.cmpi sge, %3, %8 : vector<8x8xi32>
    %cst = arith.constant -1.000000e+30 : f32
    %cst_3 = arith.constant 0.000000e+00 : f32
    %10 = vector.broadcast %cst : f32 to vector<8x8xf32>
    %11 = vector.broadcast %cst_3 : f32 to vector<8x8xf32>
    %12 = arith.select %9, %10, %11 : vector<8x8xi1>, vector<8x8xf32>
    %c2_i32_4 = arith.constant 2 : i32
    %13 = arith.muli %arg0, %c2_i32_4 : i32
    %c1_i32 = arith.constant 1 : i32
    %14 = arith.addi %13, %c1_i32 : i32
    %15 = arith.index_cast %14 : i32 to index
    %16 = memref.load %arg1[%15] : memref<2xi32, #tpu.memory_space<smem>>
    %17 = vector.broadcast %16 : i32 to vector<8x8xi32>
    %18 = arith.cmpi sge, %3, %17 : vector<8x8xi32>
    %cst_5 = arith.constant -1.000000e+30 : f32
    %cst_6 = arith.constant 0.000000e+00 : f32
    %19 = vector.broadcast %cst_5 : f32 to vector<8x8xf32>
    %20 = vector.broadcast %cst_6 : f32 to vector<8x8xf32>
    %21 = arith.select %18, %19, %20 : vector<8x8xi1>, vector<8x8xf32>
    %cst_7 = arith.constant 0.000000e+00 : f32
    %22 = vector.broadcast %cst_7 : f32 to vector<16x32xf32>
    %c0_8 = arith.constant 0 : index
    %c0_9 = arith.constant 0 : index
    %23 = vector.load %arg14[%c0_8, %c0_9] : memref<16x32xf32, #tpu.memory_space<vmem>>, vector<16x32xf32>
    tpu.vector_store %arg14[%c0_8, %c0_9], %22 {strides = array<i32>} : memref<16x32xf32, #tpu.memory_space<vmem>>, vector<16x32xf32>,
    %c0_10 = arith.constant 0 : index
    %c0_11 = arith.constant 0 : index
    %c0_12 = arith.constant 0 : index
    %24 = vector.load %arg3[%c0_10, %c0_11, %c0_12] : memref<4x32x8xbf16, #tpu.memory_space<vmem>>, vector<1x32x8xbf16>
    %25 = vector.shape_cast %24 : vector<1x32x8xbf16> to vector<32x8xbf16>
    %c0_13 = arith.constant 0 : index
    %c0_14 = arith.constant 0 : index
    %c0_15 = arith.constant 0 : index
    %26 = vector.load %arg4[%c0_13, %c0_14, %c0_15] : memref<4x32x8xbf16, #tpu.memory_space<vmem>>, vector<1x32x8xbf16>
    %27 = vector.shape_cast %26 : vector<1x32x8xbf16> to vector<32x8xbf16>
    %c0_16 = arith.constant 0 : index
    %c0_17 = arith.constant 0 : index
    %c0_18 = arith.constant 0 : index
    %28 = vector.load %arg5[%c0_16, %c0_17, %c0_18] : memref<4x32x8xbf16, #tpu.memory_space<vmem>>, vector<1x32x8xbf16>
    %29 = vector.shape_cast %28 : vector<1x32x8xbf16> to vector<32x8xbf16>
    %c0_19 = arith.constant 0 : index
    %c0_20 = arith.constant 0 : index
    %c0_21 = arith.constant 0 : index
    %30 = vector.load %arg6[%c0_19, %c0_20, %c0_21] : memref<4x8x32xbf16, #tpu.memory_space<vmem>>, vector<1x8x32xbf16>
    %31 = vector.shape_cast %30 : vector<1x8x32xbf16> to vector<8x32xbf16>
    %cst_22 = arith.constant dense<0.000000e+00> : vector<16x8xf32>
    %32 = tpu.matmul %2, %25, %cst_22 {dimension_numbers = #tpu.dot_dimension_numbers<[1], [0], [0], [1], [0, 0, 1, 1], [], []>} : vector<16x32xbf16>, vector<32x8xbf16>, vector<16x8xf32> -> vector<16x8xf32>
    %cst_23 = arith.constant dense<0.000000e+00> : vector<16x8xf32>
    %33 = tpu.matmul %2, %27, %cst_23 {dimension_numbers = #tpu.dot_dimension_numbers<[1], [0], [0], [1], [0, 0, 1, 1], [], []>} : vector<16x32xbf16>, vector<32x8xbf16>, vector<16x8xf32> -> vector<16x8xf32>
    %cst_24 = arith.constant dense<0.000000e+00> : vector<16x8xf32>
    %34 = tpu.matmul %2, %29, %cst_24 {dimension_numbers = #tpu.dot_dimension_numbers<[1], [0], [0], [1], [0, 0, 1, 1], [], []>} : vector<16x32xbf16>, vector<32x8xbf16>, vector<16x8xf32> -> vector<16x8xf32>
    %35 = vector.extract_strided_slice %32 {offsets = [0, 0], sizes = [8, 8], strides = [1, 1]} : vector<16x8xf32> to vector<8x8xf32>
    %36 = arith.truncf %35 : vector<8x8xf32> to vector<8x8xbf16>
    %37 = vector.extract_strided_slice %33 {offsets = [0, 0], sizes = [8, 8], strides = [1, 1]} : vector<16x8xf32> to vector<8x8xf32>
    %38 = arith.truncf %37 : vector<8x8xf32> to vector<8x8xbf16>
    %39 = vector.extract_strided_slice %34 {offsets = [0, 0], sizes = [8, 8], strides = [1, 1]} : vector<16x8xf32> to vector<8x8xf32>
    %40 = arith.truncf %39 : vector<8x8xf32> to vector<8x8xbf16>
    %cst_25 = arith.constant dense<0.000000e+00> : vector<8x8xf32>
    %41 = tpu.matmul %36, %38, %cst_25 {dimension_numbers = #tpu.dot_dimension_numbers<[1], [1], [0], [0], [0, 0, 1, 0], [], []>} : vector<8x8xbf16>, vector<8x8xbf16>, vector<8x8xf32> -> vector<8x8xf32>
    %cst_26 = arith.constant 0.353553385 : f32
    %42 = vector.broadcast %cst_26 : f32 to vector<8x8xf32>
    %43 = arith.mulf %41, %42 : vector<8x8xf32>
    %44 = arith.addf %43, %12 : vector<8x8xf32>
    %cst_27 = arith.constant dense<0xFF800000> : vector<8xf32>
    %45 = vector.multi_reduction <maximumf>, %44, %cst_27 [1] : vector<8x8xf32> to vector<8xf32>
    %46 = vector.shape_cast %45 : vector<8xf32> to vector<8x1xf32>
    %47 = vector.broadcast %46 : vector<8x1xf32> to vector<8x8xf32>
    %48 = arith.subf %44, %47 : vector<8x8xf32>
    %49 = math.exp %48 : vector<8x8xf32>
    %cst_28 = arith.constant dense<0.000000e+00> : vector<8xf32>
    %50 = vector.multi_reduction <add>, %49, %cst_28 [1] : vector<8x8xf32> to vector<8xf32>
    %51 = vector.shape_cast %50 : vector<8xf32> to vector<8x1xf32>
    %52 = tpu.reciprocal %51 {approx = true} : vector<8x1xf32> -> vector<8x1xf32>
    %53 = vector.broadcast %52 : vector<8x1xf32> to vector<8x8xf32>
    %54 = arith.mulf %49, %53 : vector<8x8xf32>
    %55 = arith.truncf %54 : vector<8x8xf32> to vector<8x8xbf16>
    %cst_29 = arith.constant dense<0.000000e+00> : vector<8x8xf32>
    %56 = tpu.matmul %55, %40, %cst_29 {dimension_numbers = #tpu.dot_dimension_numbers<[1], [0], [0], [1], [0, 0, 1, 1], [], []>} : vector<8x8xbf16>, vector<8x8xbf16>, vector<8x8xf32> -> vector<8x8xf32>
    %57 = arith.truncf %56 : vector<8x8xf32> to vector<8x8xbf16>
    %cst_30 = arith.constant dense<0.000000e+00> : vector<8x32xf32>
    %58 = tpu.matmul %57, %31, %cst_30 {dimension_numbers = #tpu.dot_dimension_numbers<[1], [0], [0], [1], [0, 0, 1, 1], [], []>} : vector<8x8xbf16>, vector<8x32xbf16>, vector<8x32xf32> -> vector<8x32xf32>
    %c0_31 = arith.constant 0 : index
    %c0_32 = arith.constant 0 : index
    %59 = vector.load %arg14[%c0_31, %c0_32] : memref<16x32xf32, #tpu.memory_space<vmem>>, vector<8x32xf32>
    %60 = arith.addf %59, %58 : vector<8x32xf32>
    %c0_33 = arith.constant 0 : index
    %c0_34 = arith.constant 0 : index
    %61 = vector.load %arg14[%c0_33, %c0_34] : memref<16x32xf32, #tpu.memory_space<vmem>>, vector<8x32xf32>
    tpu.vector_store %arg14[%c0_33, %c0_34], %60 {strides = array<i32>} : memref<16x32xf32, #tpu.memory_space<vmem>>, vector<8x32xf32>,
    %62 = vector.extract_strided_slice %32 {offsets = [8, 0], sizes = [8, 8], strides = [1, 1]} : vector<16x8xf32> to vector<8x8xf32>
    %63 = arith.truncf %62 : vector<8x8xf32> to vector<8x8xbf16>
    %64 = vector.extract_strided_slice %33 {offsets = [8, 0], sizes = [8, 8], strides = [1, 1]} : vector<16x8xf32> to vector<8x8xf32>
    %65 = arith.truncf %64 : vector<8x8xf32> to vector<8x8xbf16>
    %66 = vector.extract_strided_slice %34 {offsets = [8, 0], sizes = [8, 8], strides = [1, 1]} : vector<16x8xf32> to vector<8x8xf32>
    %67 = arith.truncf %66 : vector<8x8xf32> to vector<8x8xbf16>
    %cst_35 = arith.constant dense<0.000000e+00> : vector<8x8xf32>
    %68 = tpu.matmul %63, %65, %cst_35 {dimension_numbers = #tpu.dot_dimension_numbers<[1], [1], [0], [0], [0, 0, 1, 0], [], []>} : vector<8x8xbf16>, vector<8x8xbf16>, vector<8x8xf32> -> vector<8x8xf32>
    %cst_36 = arith.constant 0.353553385 : f32
    %69 = vector.broadcast %cst_36 : f32 to vector<8x8xf32>
    %70 = arith.mulf %68, %69 : vector<8x8xf32>
    %71 = arith.addf %70, %21 : vector<8x8xf32>
    %cst_37 = arith.constant dense<0xFF800000> : vector<8xf32>
    %72 = vector.multi_reduction <maximumf>, %71, %cst_37 [1] : vector<8x8xf32> to vector<8xf32>
    %73 = vector.shape_cast %72 : vector<8xf32> to vector<8x1xf32>
    %74 = vector.broadcast %73 : vector<8x1xf32> to vector<8x8xf32>
    %75 = arith.subf %71, %74 : vector<8x8xf32>
    %76 = math.exp %75 : vector<8x8xf32>
    %cst_38 = arith.constant dense<0.000000e+00> : vector<8xf32>
    %77 = vector.multi_reduction <add>, %76, %cst_38 [1] : vector<8x8xf32> to vector<8xf32>
    %78 = vector.shape_cast %77 : vector<8xf32> to vector<8x1xf32>
    %79 = tpu.reciprocal %78 {approx = true} : vector<8x1xf32> -> vector<8x1xf32>
    %80 = vector.broadcast %79 : vector<8x1xf32> to vector<8x8xf32>
    %81 = arith.mulf %76, %80 : vector<8x8xf32>
    %82 = arith.truncf %81 : vector<8x8xf32> to vector<8x8xbf16>
    %cst_39 = arith.constant dense<0.000000e+00> : vector<8x8xf32>
    %83 = tpu.matmul %82, %67, %cst_39 {dimension_numbers = #tpu.dot_dimension_numbers<[1], [0], [0], [1], [0, 0, 1, 1], [], []>} : vector<8x8xbf16>, vector<8x8xbf16>, vector<8x8xf32> -> vector<8x8xf32>
    %84 = arith.truncf %83 : vector<8x8xf32> to vector<8x8xbf16>
    %cst_40 = arith.constant dense<0.000000e+00> : vector<8x32xf32>
    %85 = tpu.matmul %84, %31, %cst_40 {dimension_numbers = #tpu.dot_dimension_numbers<[1], [0], [0], [1], [0, 0, 1, 1], [], []>} : vector<8x8xbf16>, vector<8x32xbf16>, vector<8x32xf32> -> vector<8x32xf32>
    %c8 = arith.constant 8 : index
    %c0_41 = arith.constant 0 : index
    %86 = vector.load %arg14[%c8, %c0_41] : memref<16x32xf32, #tpu.memory_space<vmem>>, vector<8x32xf32>
    %87 = arith.addf %86, %85 : vector<8x32xf32>
    %c8_42 = arith.constant 8 : index
    %c0_43 = arith.constant 0 : index
    %88 = vector.load %arg14[%c8_42, %c0_43] : memref<16x32xf32, #tpu.memory_space<vmem>>, vector<8x32xf32>
    tpu.vector_store %arg14[%c8_42, %c0_43], %87 {strides = array<i32>} : memref<16x32xf32, #tpu.memory_space<vmem>>, vector<8x32xf32>,
    %c1 = arith.constant 1 : index
    %c0_44 = arith.constant 0 : index
    %c0_45 = arith.constant 0 : index
    %89 = vector.load %arg3[%c1, %c0_44, %c0_45] : memref<4x32x8xbf16, #tpu.memory_space<vmem>>, vector<1x32x8xbf16>
    %90 = vector.shape_cast %89 : vector<1x32x8xbf16> to vector<32x8xbf16>
    %c1_46 = arith.constant 1 : index
    %c0_47 = arith.constant 0 : index
    %c0_48 = arith.constant 0 : index
    %91 = vector.load %arg4[%c1_46, %c0_47, %c0_48] : memref<4x32x8xbf16, #tpu.memory_space<vmem>>, vector<1x32x8xbf16>
    %92 = vector.shape_cast %91 : vector<1x32x8xbf16> to vector<32x8xbf16>
    %c1_49 = arith.constant 1 : index
    %c0_50 = arith.constant 0 : index
    %c0_51 = arith.constant 0 : index
    %93 = vector.load %arg5[%c1_49, %c0_50, %c0_51] : memref<4x32x8xbf16, #tpu.memory_space<vmem>>, vector<1x32x8xbf16>
    %94 = vector.shape_cast %93 : vector<1x32x8xbf16> to vector<32x8xbf16>
    %c1_52 = arith.constant 1 : index
    %c0_53 = arith.constant 0 : index
    %c0_54 = arith.constant 0 : index
    %95 = vector.load %arg6[%c1_52, %c0_53, %c0_54] : memref<4x8x32xbf16, #tpu.memory_space<vmem>>, vector<1x8x32xbf16>
    %96 = vector.shape_cast %95 : vector<1x8x32xbf16> to vector<8x32xbf16>
    %cst_55 = arith.constant dense<0.000000e+00> : vector<16x8xf32>
    %97 = tpu.matmul %2, %90, %cst_55 {dimension_numbers = #tpu.dot_dimension_numbers<[1], [0], [0], [1], [0, 0, 1, 1], [], []>} : vector<16x32xbf16>, vector<32x8xbf16>, vector<16x8xf32> -> vector<16x8xf32>
    %cst_56 = arith.constant dense<0.000000e+00> : vector<16x8xf32>
    %98 = tpu.matmul %2, %92, %cst_56 {dimension_numbers = #tpu.dot_dimension_numbers<[1], [0], [0], [1], [0, 0, 1, 1], [], []>} : vector<16x32xbf16>, vector<32x8xbf16>, vector<16x8xf32> -> vector<16x8xf32>
    %cst_57 = arith.constant dense<0.000000e+00> : vector<16x8xf32>
    %99 = tpu.matmul %2, %94, %cst_57 {dimension_numbers = #tpu.dot_dimension_numbers<[1], [0], [0], [1], [0, 0, 1, 1], [], []>} : vector<16x32xbf16>, vector<32x8xbf16>, vector<16x8xf32> -> vector<16x8xf32>
    %100 = vector.extract_strided_slice %97 {offsets = [0, 0], sizes = [8, 8], strides = [1, 1]} : vector<16x8xf32> to vector<8x8xf32>
    %101 = arith.truncf %100 : vector<8x8xf32> to vector<8x8xbf16>
    %102 = vector.extract_strided_slice %98 {offsets = [0, 0], sizes = [8, 8], strides = [1, 1]} : vector<16x8xf32> to vector<8x8xf32>
    %103 = arith.truncf %102 : vector<8x8xf32> to vector<8x8xbf16>
    %104 = vector.extract_strided_slice %99 {offsets = [0, 0], sizes = [8, 8], strides = [1, 1]} : vector<16x8xf32> to vector<8x8xf32>
    %105 = arith.truncf %104 : vector<8x8xf32> to vector<8x8xbf16>
    %cst_58 = arith.constant dense<0.000000e+00> : vector<8x8xf32>
    %106 = tpu.matmul %101, %103, %cst_58 {dimension_numbers = #tpu.dot_dimension_numbers<[1], [1], [0], [0], [0, 0, 1, 0], [], []>} : vector<8x8xbf16>, vector<8x8xbf16>, vector<8x8xf32> -> vector<8x8xf32>
    %cst_59 = arith.constant 0.353553385 : f32
    %107 = vector.broadcast %cst_59 : f32 to vector<8x8xf32>
    %108 = arith.mulf %106, %107 : vector<8x8xf32>
    %109 = arith.addf %108, %12 : vector<8x8xf32>
    %cst_60 = arith.constant dense<0xFF800000> : vector<8xf32>
    %110 = vector.multi_reduction <maximumf>, %109, %cst_60 [1] : vector<8x8xf32> to vector<8xf32>
    %111 = vector.shape_cast %110 : vector<8xf32> to vector<8x1xf32>
    %112 = vector.broadcast %111 : vector<8x1xf32> to vector<8x8xf32>
    %113 = arith.subf %109, %112 : vector<8x8xf32>
    %114 = math.exp %113 : vector<8x8xf32>
    %cst_61 = arith.constant dense<0.000000e+00> : vector<8xf32>
    %115 = vector.multi_reduction <add>, %114, %cst_61 [1] : vector<8x8xf32> to vector<8xf32>
    %116 = vector.shape_cast %115 : vector<8xf32> to vector<8x1xf32>
    %117 = tpu.reciprocal %116 {approx = true} : vector<8x1xf32> -> vector<8x1xf32>
    %118 = vector.broadcast %117 : vector<8x1xf32> to vector<8x8xf32>
    %119 = arith.mulf %114, %118 : vector<8x8xf32>
    %120 = arith.truncf %119 : vector<8x8xf32> to vector<8x8xbf16>
    %cst_62 = arith.constant dense<0.000000e+00> : vector<8x8xf32>
    %121 = tpu.matmul %120, %105, %cst_62 {dimension_numbers = #tpu.dot_dimension_numbers<[1], [0], [0], [1], [0, 0, 1, 1], [], []>} : vector<8x8xbf16>, vector<8x8xbf16>, vector<8x8xf32> -> vector<8x8xf32>
    %122 = arith.truncf %121 : vector<8x8xf32> to vector<8x8xbf16>
    %cst_63 = arith.constant dense<0.000000e+00> : vector<8x32xf32>
    %123 = tpu.matmul %122, %96, %cst_63 {dimension_numbers = #tpu.dot_dimension_numbers<[1], [0], [0], [1], [0, 0, 1, 1], [], []>} : vector<8x8xbf16>, vector<8x32xbf16>, vector<8x32xf32> -> vector<8x32xf32>
    %c0_64 = arith.constant 0 : index
    %c0_65 = arith.constant 0 : index
    %124 = vector.load %arg14[%c0_64, %c0_65] : memref<16x32xf32, #tpu.memory_space<vmem>>, vector<8x32xf32>
    %125 = arith.addf %124, %123 : vector<8x32xf32>
    %c0_66 = arith.constant 0 : index
    %c0_67 = arith.constant 0 : index
    %126 = vector.load %arg14[%c0_66, %c0_67] : memref<16x32xf32, #tpu.memory_space<vmem>>, vector<8x32xf32>
    tpu.vector_store %arg14[%c0_66, %c0_67], %125 {strides = array<i32>} : memref<16x32xf32, #tpu.memory_space<vmem>>, vector<8x32xf32>,
    %127 = vector.extract_strided_slice %97 {offsets = [8, 0], sizes = [8, 8], strides = [1, 1]} : vector<16x8xf32> to vector<8x8xf32>
    %128 = arith.truncf %127 : vector<8x8xf32> to vector<8x8xbf16>
    %129 = vector.extract_strided_slice %98 {offsets = [8, 0], sizes = [8, 8], strides = [1, 1]} : vector<16x8xf32> to vector<8x8xf32>
    %130 = arith.truncf %129 : vector<8x8xf32> to vector<8x8xbf16>
    %131 = vector.extract_strided_slice %99 {offsets = [8, 0], sizes = [8, 8], strides = [1, 1]} : vector<16x8xf32> to vector<8x8xf32>
    %132 = arith.truncf %131 : vector<8x8xf32> to vector<8x8xbf16>
    %cst_68 = arith.constant dense<0.000000e+00> : vector<8x8xf32>
    %133 = tpu.matmul %128, %130, %cst_68 {dimension_numbers = #tpu.dot_dimension_numbers<[1], [1], [0], [0], [0, 0, 1, 0], [], []>} : vector<8x8xbf16>, vector<8x8xbf16>, vector<8x8xf32> -> vector<8x8xf32>
    %cst_69 = arith.constant 0.353553385 : f32
    %134 = vector.broadcast %cst_69 : f32 to vector<8x8xf32>
    %135 = arith.mulf %133, %134 : vector<8x8xf32>
    %136 = arith.addf %135, %21 : vector<8x8xf32>
    %cst_70 = arith.constant dense<0xFF800000> : vector<8xf32>
    %137 = vector.multi_reduction <maximumf>, %136, %cst_70 [1] : vector<8x8xf32> to vector<8xf32>
    %138 = vector.shape_cast %137 : vector<8xf32> to vector<8x1xf32>
    %139 = vector.broadcast %138 : vector<8x1xf32> to vector<8x8xf32>
    %140 = arith.subf %136, %139 : vector<8x8xf32>
    %141 = math.exp %140 : vector<8x8xf32>
    %cst_71 = arith.constant dense<0.000000e+00> : vector<8xf32>
    %142 = vector.multi_reduction <add>, %141, %cst_71 [1] : vector<8x8xf32> to vector<8xf32>
    %143 = vector.shape_cast %142 : vector<8xf32> to vector<8x1xf32>
    %144 = tpu.reciprocal %143 {approx = true} : vector<8x1xf32> -> vector<8x1xf32>
    %145 = vector.broadcast %144 : vector<8x1xf32> to vector<8x8xf32>
    %146 = arith.mulf %141, %145 : vector<8x8xf32>
    %147 = arith.truncf %146 : vector<8x8xf32> to vector<8x8xbf16>
    %cst_72 = arith.constant dense<0.000000e+00> : vector<8x8xf32>
    %148 = tpu.matmul %147, %132, %cst_72 {dimension_numbers = #tpu.dot_dimension_numbers<[1], [0], [0], [1], [0, 0, 1, 1], [], []>} : vector<8x8xbf16>, vector<8x8xbf16>, vector<8x8xf32> -> vector<8x8xf32>
    %149 = arith.truncf %148 : vector<8x8xf32> to vector<8x8xbf16>
    %cst_73 = arith.constant dense<0.000000e+00> : vector<8x32xf32>
    %150 = tpu.matmul %149, %96, %cst_73 {dimension_numbers = #tpu.dot_dimension_numbers<[1], [0], [0], [1], [0, 0, 1, 1], [], []>} : vector<8x8xbf16>, vector<8x32xbf16>, vector<8x32xf32> -> vector<8x32xf32>
    %c8_74 = arith.constant 8 : index
    %c0_75 = arith.constant 0 : index
    %151 = vector.load %arg14[%c8_74, %c0_75] : memref<16x32xf32, #tpu.memory_space<vmem>>, vector<8x32xf32>
    %152 = arith.addf %151, %150 : vector<8x32xf32>
    %c8_76 = arith.constant 8 : index
    %c0_77 = arith.constant 0 : index
    %153 = vector.load %arg14[%c8_76, %c0_77] : memref<16x32xf32, #tpu.memory_space<vmem>>, vector<8x32xf32>
    tpu.vector_store %arg14[%c8_76, %c0_77], %152 {strides = array<i32>} : memref<16x32xf32, #tpu.memory_space<vmem>>, vector<8x32xf32>,
    %c2 = arith.constant 2 : index
    %c0_78 = arith.constant 0 : index
    %c0_79 = arith.constant 0 : index
    %154 = vector.load %arg3[%c2, %c0_78, %c0_79] : memref<4x32x8xbf16, #tpu.memory_space<vmem>>, vector<1x32x8xbf16>
    %155 = vector.shape_cast %154 : vector<1x32x8xbf16> to vector<32x8xbf16>
    %c2_80 = arith.constant 2 : index
    %c0_81 = arith.constant 0 : index
    %c0_82 = arith.constant 0 : index
    %156 = vector.load %arg4[%c2_80, %c0_81, %c0_82] : memref<4x32x8xbf16, #tpu.memory_space<vmem>>, vector<1x32x8xbf16>
    %157 = vector.shape_cast %156 : vector<1x32x8xbf16> to vector<32x8xbf16>
    %c2_83 = arith.constant 2 : index
    %c0_84 = arith.constant 0 : index
    %c0_85 = arith.constant 0 : index
    %158 = vector.load %arg5[%c2_83, %c0_84, %c0_85] : memref<4x32x8xbf16, #tpu.memory_space<vmem>>, vector<1x32x8xbf16>
    %159 = vector.shape_cast %158 : vector<1x32x8xbf16> to vector<32x8xbf16>
    %c2_86 = arith.constant 2 : index
    %c0_87 = arith.constant 0 : index
    %c0_88 = arith.constant 0 : index
    %160 = vector.load %arg6[%c2_86, %c0_87, %c0_88] : memref<4x8x32xbf16, #tpu.memory_space<vmem>>, vector<1x8x32xbf16>
    %161 = vector.shape_cast %160 : vector<1x8x32xbf16> to vector<8x32xbf16>
    %cst_89 = arith.constant dense<0.000000e+00> : vector<16x8xf32>
    %162 = tpu.matmul %2, %155, %cst_89 {dimension_numbers = #tpu.dot_dimension_numbers<[1], [0], [0], [1], [0, 0, 1, 1], [], []>} : vector<16x32xbf16>, vector<32x8xbf16>, vector<16x8xf32> -> vector<16x8xf32>
    %cst_90 = arith.constant dense<0.000000e+00> : vector<16x8xf32>
    %163 = tpu.matmul %2, %157, %cst_90 {dimension_numbers = #tpu.dot_dimension_numbers<[1], [0], [0], [1], [0, 0, 1, 1], [], []>} : vector<16x32xbf16>, vector<32x8xbf16>, vector<16x8xf32> -> vector<16x8xf32>
    %cst_91 = arith.constant dense<0.000000e+00> : vector<16x8xf32>
    %164 = tpu.matmul %2, %159, %cst_91 {dimension_numbers = #tpu.dot_dimension_numbers<[1], [0], [0], [1], [0, 0, 1, 1], [], []>} : vector<16x32xbf16>, vector<32x8xbf16>, vector<16x8xf32> -> vector<16x8xf32>
    %165 = vector.extract_strided_slice %162 {offsets = [0, 0], sizes = [8, 8], strides = [1, 1]} : vector<16x8xf32> to vector<8x8xf32>
    %166 = arith.truncf %165 : vector<8x8xf32> to vector<8x8xbf16>
    %167 = vector.extract_strided_slice %163 {offsets = [0, 0], sizes = [8, 8], strides = [1, 1]} : vector<16x8xf32> to vector<8x8xf32>
    %168 = arith.truncf %167 : vector<8x8xf32> to vector<8x8xbf16>
    %169 = vector.extract_strided_slice %164 {offsets = [0, 0], sizes = [8, 8], strides = [1, 1]} : vector<16x8xf32> to vector<8x8xf32>
    %170 = arith.truncf %169 : vector<8x8xf32> to vector<8x8xbf16>
    %cst_92 = arith.constant dense<0.000000e+00> : vector<8x8xf32>
    %171 = tpu.matmul %166, %168, %cst_92 {dimension_numbers = #tpu.dot_dimension_numbers<[1], [1], [0], [0], [0, 0, 1, 0], [], []>} : vector<8x8xbf16>, vector<8x8xbf16>, vector<8x8xf32> -> vector<8x8xf32>
    %cst_93 = arith.constant 0.353553385 : f32
    %172 = vector.broadcast %cst_93 : f32 to vector<8x8xf32>
    %173 = arith.mulf %171, %172 : vector<8x8xf32>
    %174 = arith.addf %173, %12 : vector<8x8xf32>
    %cst_94 = arith.constant dense<0xFF800000> : vector<8xf32>
    %175 = vector.multi_reduction <maximumf>, %174, %cst_94 [1] : vector<8x8xf32> to vector<8xf32>
    %176 = vector.shape_cast %175 : vector<8xf32> to vector<8x1xf32>
    %177 = vector.broadcast %176 : vector<8x1xf32> to vector<8x8xf32>
    %178 = arith.subf %174, %177 : vector<8x8xf32>
    %179 = math.exp %178 : vector<8x8xf32>
    %cst_95 = arith.constant dense<0.000000e+00> : vector<8xf32>
    %180 = vector.multi_reduction <add>, %179, %cst_95 [1] : vector<8x8xf32> to vector<8xf32>
    %181 = vector.shape_cast %180 : vector<8xf32> to vector<8x1xf32>
    %182 = tpu.reciprocal %181 {approx = true} : vector<8x1xf32> -> vector<8x1xf32>
    %183 = vector.broadcast %182 : vector<8x1xf32> to vector<8x8xf32>
    %184 = arith.mulf %179, %183 : vector<8x8xf32>
    %185 = arith.truncf %184 : vector<8x8xf32> to vector<8x8xbf16>
    %cst_96 = arith.constant dense<0.000000e+00> : vector<8x8xf32>
    %186 = tpu.matmul %185, %170, %cst_96 {dimension_numbers = #tpu.dot_dimension_numbers<[1], [0], [0], [1], [0, 0, 1, 1], [], []>} : vector<8x8xbf16>, vector<8x8xbf16>, vector<8x8xf32> -> vector<8x8xf32>
    %187 = arith.truncf %186 : vector<8x8xf32> to vector<8x8xbf16>
    %cst_97 = arith.constant dense<0.000000e+00> : vector<8x32xf32>
    %188 = tpu.matmul %187, %161, %cst_97 {dimension_numbers = #tpu.dot_dimension_numbers<[1], [0], [0], [1], [0, 0, 1, 1], [], []>} : vector<8x8xbf16>, vector<8x32xbf16>, vector<8x32xf32> -> vector<8x32xf32>
    %c0_98 = arith.constant 0 : index
    %c0_99 = arith.constant 0 : index
    %189 = vector.load %arg14[%c0_98, %c0_99] : memref<16x32xf32, #tpu.memory_space<vmem>>, vector<8x32xf32>
    %190 = arith.addf %189, %188 : vector<8x32xf32>
    %c0_100 = arith.constant 0 : index
    %c0_101 = arith.constant 0 : index
    %191 = vector.load %arg14[%c0_100, %c0_101] : memref<16x32xf32, #tpu.memory_space<vmem>>, vector<8x32xf32>
    tpu.vector_store %arg14[%c0_100, %c0_101], %190 {strides = array<i32>} : memref<16x32xf32, #tpu.memory_space<vmem>>, vector<8x32xf32>,
    %192 = vector.extract_strided_slice %162 {offsets = [8, 0], sizes = [8, 8], strides = [1, 1]} : vector<16x8xf32> to vector<8x8xf32>
    %193 = arith.truncf %192 : vector<8x8xf32> to vector<8x8xbf16>
    %194 = vector.extract_strided_slice %163 {offsets = [8, 0], sizes = [8, 8], strides = [1, 1]} : vector<16x8xf32> to vector<8x8xf32>
    %195 = arith.truncf %194 : vector<8x8xf32> to vector<8x8xbf16>
    %196 = vector.extract_strided_slice %164 {offsets = [8, 0], sizes = [8, 8], strides = [1, 1]} : vector<16x8xf32> to vector<8x8xf32>
    %197 = arith.truncf %196 : vector<8x8xf32> to vector<8x8xbf16>
    %cst_102 = arith.constant dense<0.000000e+00> : vector<8x8xf32>
    %198 = tpu.matmul %193, %195, %cst_102 {dimension_numbers = #tpu.dot_dimension_numbers<[1], [1], [0], [0], [0, 0, 1, 0], [], []>} : vector<8x8xbf16>, vector<8x8xbf16>, vector<8x8xf32> -> vector<8x8xf32>
    %cst_103 = arith.constant 0.353553385 : f32
    %199 = vector.broadcast %cst_103 : f32 to vector<8x8xf32>
    %200 = arith.mulf %198, %199 : vector<8x8xf32>
    %201 = arith.addf %200, %21 : vector<8x8xf32>
    %cst_104 = arith.constant dense<0xFF800000> : vector<8xf32>
    %202 = vector.multi_reduction <maximumf>, %201, %cst_104 [1] : vector<8x8xf32> to vector<8xf32>
    %203 = vector.shape_cast %202 : vector<8xf32> to vector<8x1xf32>
    %204 = vector.broadcast %203 : vector<8x1xf32> to vector<8x8xf32>
    %205 = arith.subf %201, %204 : vector<8x8xf32>
    %206 = math.exp %205 : vector<8x8xf32>
    %cst_105 = arith.constant dense<0.000000e+00> : vector<8xf32>
    %207 = vector.multi_reduction <add>, %206, %cst_105 [1] : vector<8x8xf32> to vector<8xf32>
    %208 = vector.shape_cast %207 : vector<8xf32> to vector<8x1xf32>
    %209 = tpu.reciprocal %208 {approx = true} : vector<8x1xf32> -> vector<8x1xf32>
    %210 = vector.broadcast %209 : vector<8x1xf32> to vector<8x8xf32>
    %211 = arith.mulf %206, %210 : vector<8x8xf32>
    %212 = arith.truncf %211 : vector<8x8xf32> to vector<8x8xbf16>
    %cst_106 = arith.constant dense<0.000000e+00> : vector<8x8xf32>
    %213 = tpu.matmul %212, %197, %cst_106 {dimension_numbers = #tpu.dot_dimension_numbers<[1], [0], [0], [1], [0, 0, 1, 1], [], []>} : vector<8x8xbf16>, vector<8x8xbf16>, vector<8x8xf32> -> vector<8x8xf32>
    %214 = arith.truncf %213 : vector<8x8xf32> to vector<8x8xbf16>
    %cst_107 = arith.constant dense<0.000000e+00> : vector<8x32xf32>
    %215 = tpu.matmul %214, %161, %cst_107 {dimension_numbers = #tpu.dot_dimension_numbers<[1], [0], [0], [1], [0, 0, 1, 1], [], []>} : vector<8x8xbf16>, vector<8x32xbf16>, vector<8x32xf32> -> vector<8x32xf32>
    %c8_108 = arith.constant 8 : index
    %c0_109 = arith.constant 0 : index
    %216 = vector.load %arg14[%c8_108, %c0_109] : memref<16x32xf32, #tpu.memory_space<vmem>>, vector<8x32xf32>
    %217 = arith.addf %216, %215 : vector<8x32xf32>
    %c8_110 = arith.constant 8 : index
    %c0_111 = arith.constant 0 : index
    %218 = vector.load %arg14[%c8_110, %c0_111] : memref<16x32xf32, #tpu.memory_space<vmem>>, vector<8x32xf32>
    tpu.vector_store %arg14[%c8_110, %c0_111], %217 {strides = array<i32>} : memref<16x32xf32, #tpu.memory_space<vmem>>, vector<8x32xf32>,
    %c3 = arith.constant 3 : index
    %c0_112 = arith.constant 0 : index
    %c0_113 = arith.constant 0 : index
    %219 = vector.load %arg3[%c3, %c0_112, %c0_113] : memref<4x32x8xbf16, #tpu.memory_space<vmem>>, vector<1x32x8xbf16>
    %220 = vector.shape_cast %219 : vector<1x32x8xbf16> to vector<32x8xbf16>
    %c3_114 = arith.constant 3 : index
    %c0_115 = arith.constant 0 : index
    %c0_116 = arith.constant 0 : index
    %221 = vector.load %arg4[%c3_114, %c0_115, %c0_116] : memref<4x32x8xbf16, #tpu.memory_space<vmem>>, vector<1x32x8xbf16>
    %222 = vector.shape_cast %221 : vector<1x32x8xbf16> to vector<32x8xbf16>
    %c3_117 = arith.constant 3 : index
    %c0_118 = arith.constant 0 : index
    %c0_119 = arith.constant 0 : index
    %223 = vector.load %arg5[%c3_117, %c0_118, %c0_119] : memref<4x32x8xbf16, #tpu.memory_space<vmem>>, vector<1x32x8xbf16>
    %224 = vector.shape_cast %223 : vector<1x32x8xbf16> to vector<32x8xbf16>
    %c3_120 = arith.constant 3 : index
    %c0_121 = arith.constant 0 : index
    %c0_122 = arith.constant 0 : index
    %225 = vector.load %arg6[%c3_120, %c0_121, %c0_122] : memref<4x8x32xbf16, #tpu.memory_space<vmem>>, vector<1x8x32xbf16>
    %226 = vector.shape_cast %225 : vector<1x8x32xbf16> to vector<8x32xbf16>
    %cst_123 = arith.constant dense<0.000000e+00> : vector<16x8xf32>
    %227 = tpu.matmul %2, %220, %cst_123 {dimension_numbers = #tpu.dot_dimension_numbers<[1], [0], [0], [1], [0, 0, 1, 1], [], []>} : vector<16x32xbf16>, vector<32x8xbf16>, vector<16x8xf32> -> vector<16x8xf32>
    %cst_124 = arith.constant dense<0.000000e+00> : vector<16x8xf32>
    %228 = tpu.matmul %2, %222, %cst_124 {dimension_numbers = #tpu.dot_dimension_numbers<[1], [0], [0], [1], [0, 0, 1, 1], [], []>} : vector<16x32xbf16>, vector<32x8xbf16>, vector<16x8xf32> -> vector<16x8xf32>
    %cst_125 = arith.constant dense<0.000000e+00> : vector<16x8xf32>
    %229 = tpu.matmul %2, %224, %cst_125 {dimension_numbers = #tpu.dot_dimension_numbers<[1], [0], [0], [1], [0, 0, 1, 1], [], []>} : vector<16x32xbf16>, vector<32x8xbf16>, vector<16x8xf32> -> vector<16x8xf32>
    %230 = vector.extract_strided_slice %227 {offsets = [0, 0], sizes = [8, 8], strides = [1, 1]} : vector<16x8xf32> to vector<8x8xf32>
    %231 = arith.truncf %230 : vector<8x8xf32> to vector<8x8xbf16>
    %232 = vector.extract_strided_slice %228 {offsets = [0, 0], sizes = [8, 8], strides = [1, 1]} : vector<16x8xf32> to vector<8x8xf32>
    %233 = arith.truncf %232 : vector<8x8xf32> to vector<8x8xbf16>
    %234 = vector.extract_strided_slice %229 {offsets = [0, 0], sizes = [8, 8], strides = [1, 1]} : vector<16x8xf32> to vector<8x8xf32>
    %235 = arith.truncf %234 : vector<8x8xf32> to vector<8x8xbf16>
    %cst_126 = arith.constant dense<0.000000e+00> : vector<8x8xf32>
    %236 = tpu.matmul %231, %233, %cst_126 {dimension_numbers = #tpu.dot_dimension_numbers<[1], [1], [0], [0], [0, 0, 1, 0], [], []>} : vector<8x8xbf16>, vector<8x8xbf16>, vector<8x8xf32> -> vector<8x8xf32>
    %cst_127 = arith.constant 0.353553385 : f32
    %237 = vector.broadcast %cst_127 : f32 to vector<8x8xf32>
    %238 = arith.mulf %236, %237 : vector<8x8xf32>
    %239 = arith.addf %238, %12 : vector<8x8xf32>
    %cst_128 = arith.constant dense<0xFF800000> : vector<8xf32>
    %240 = vector.multi_reduction <maximumf>, %239, %cst_128 [1] : vector<8x8xf32> to vector<8xf32>
    %241 = vector.shape_cast %240 : vector<8xf32> to vector<8x1xf32>
    %242 = vector.broadcast %241 : vector<8x1xf32> to vector<8x8xf32>
    %243 = arith.subf %239, %242 : vector<8x8xf32>
    %244 = math.exp %243 : vector<8x8xf32>
    %cst_129 = arith.constant dense<0.000000e+00> : vector<8xf32>
    %245 = vector.multi_reduction <add>, %244, %cst_129 [1] : vector<8x8xf32> to vector<8xf32>
    %246 = vector.shape_cast %245 : vector<8xf32> to vector<8x1xf32>
    %247 = tpu.reciprocal %246 {approx = true} : vector<8x1xf32> -> vector<8x1xf32>
    %248 = vector.broadcast %247 : vector<8x1xf32> to vector<8x8xf32>
    %249 = arith.mulf %244, %248 : vector<8x8xf32>
    %250 = arith.truncf %249 : vector<8x8xf32> to vector<8x8xbf16>
    %cst_130 = arith.constant dense<0.000000e+00> : vector<8x8xf32>
    %251 = tpu.matmul %250, %235, %cst_130 {dimension_numbers = #tpu.dot_dimension_numbers<[1], [0], [0], [1], [0, 0, 1, 1], [], []>} : vector<8x8xbf16>, vector<8x8xbf16>, vector<8x8xf32> -> vector<8x8xf32>
    %252 = arith.truncf %251 : vector<8x8xf32> to vector<8x8xbf16>
    %cst_131 = arith.constant dense<0.000000e+00> : vector<8x32xf32>
    %253 = tpu.matmul %252, %226, %cst_131 {dimension_numbers = #tpu.dot_dimension_numbers<[1], [0], [0], [1], [0, 0, 1, 1], [], []>} : vector<8x8xbf16>, vector<8x32xbf16>, vector<8x32xf32> -> vector<8x32xf32>
    %c0_132 = arith.constant 0 : index
    %c0_133 = arith.constant 0 : index
    %254 = vector.load %arg14[%c0_132, %c0_133] : memref<16x32xf32, #tpu.memory_space<vmem>>, vector<8x32xf32>
    %255 = arith.addf %254, %253 : vector<8x32xf32>
    %c0_134 = arith.constant 0 : index
    %c0_135 = arith.constant 0 : index
    %256 = vector.load %arg14[%c0_134, %c0_135] : memref<16x32xf32, #tpu.memory_space<vmem>>, vector<8x32xf32>
    tpu.vector_store %arg14[%c0_134, %c0_135], %255 {strides = array<i32>} : memref<16x32xf32, #tpu.memory_space<vmem>>, vector<8x32xf32>,
    %257 = vector.extract_strided_slice %227 {offsets = [8, 0], sizes = [8, 8], strides = [1, 1]} : vector<16x8xf32> to vector<8x8xf32>
    %258 = arith.truncf %257 : vector<8x8xf32> to vector<8x8xbf16>
    %259 = vector.extract_strided_slice %228 {offsets = [8, 0], sizes = [8, 8], strides = [1, 1]} : vector<16x8xf32> to vector<8x8xf32>
    %260 = arith.truncf %259 : vector<8x8xf32> to vector<8x8xbf16>
    %261 = vector.extract_strided_slice %229 {offsets = [8, 0], sizes = [8, 8], strides = [1, 1]} : vector<16x8xf32> to vector<8x8xf32>
    %262 = arith.truncf %261 : vector<8x8xf32> to vector<8x8xbf16>
    %cst_136 = arith.constant dense<0.000000e+00> : vector<8x8xf32>
    %263 = tpu.matmul %258, %260, %cst_136 {dimension_numbers = #tpu.dot_dimension_numbers<[1], [1], [0], [0], [0, 0, 1, 0], [], []>} : vector<8x8xbf16>, vector<8x8xbf16>, vector<8x8xf32> -> vector<8x8xf32>
    %cst_137 = arith.constant 0.353553385 : f32
    %264 = vector.broadcast %cst_137 : f32 to vector<8x8xf32>
    %265 = arith.mulf %263, %264 : vector<8x8xf32>
    %266 = arith.addf %265, %21 : vector<8x8xf32>
    %cst_138 = arith.constant dense<0xFF800000> : vector<8xf32>
    %267 = vector.multi_reduction <maximumf>, %266, %cst_138 [1] : vector<8x8xf32> to vector<8xf32>
    %268 = vector.shape_cast %267 : vector<8xf32> to vector<8x1xf32>
    %269 = vector.broadcast %268 : vector<8x1xf32> to vector<8x8xf32>
    %270 = arith.subf %266, %269 : vector<8x8xf32>
    %271 = math.exp %270 : vector<8x8xf32>
    %cst_139 = arith.constant dense<0.000000e+00> : vector<8xf32>
    %272 = vector.multi_reduction <add>, %271, %cst_139 [1] : vector<8x8xf32> to vector<8xf32>
    %273 = vector.shape_cast %272 : vector<8xf32> to vector<8x1xf32>
    %274 = tpu.reciprocal %273 {approx = true} : vector<8x1xf32> -> vector<8x1xf32>
    %275 = vector.broadcast %274 : vector<8x1xf32> to vector<8x8xf32>
    %276 = arith.mulf %271, %275 : vector<8x8xf32>
    %277 = arith.truncf %276 : vector<8x8xf32> to vector<8x8xbf16>
    %cst_140 = arith.constant dense<0.000000e+00> : vector<8x8xf32>
    %278 = tpu.matmul %277, %262, %cst_140 {dimension_numbers = #tpu.dot_dimension_numbers<[1], [0], [0], [1], [0, 0, 1, 1], [], []>} : vector<8x8xbf16>, vector<8x8xbf16>, vector<8x8xf32> -> vector<8x8xf32>
    %279 = arith.truncf %278 : vector<8x8xf32> to vector<8x8xbf16>
    %cst_141 = arith.constant dense<0.000000e+00> : vector<8x32xf32>
    %280 = tpu.matmul %279, %226, %cst_141 {dimension_numbers = #tpu.dot_dimension_numbers<[1], [0], [0], [1], [0, 0, 1, 1], [], []>} : vector<8x8xbf16>, vector<8x32xbf16>, vector<8x32xf32> -> vector<8x32xf32>
    %c8_142 = arith.constant 8 : index
    %c0_143 = arith.constant 0 : index
    %281 = vector.load %arg14[%c8_142, %c0_143] : memref<16x32xf32, #tpu.memory_space<vmem>>, vector<8x32xf32>
    %282 = arith.addf %281, %280 : vector<8x32xf32>
    %c8_144 = arith.constant 8 : index
    %c0_145 = arith.constant 0 : index
    %283 = vector.load %arg14[%c8_144, %c0_145] : memref<16x32xf32, #tpu.memory_space<vmem>>, vector<8x32xf32>
    tpu.vector_store %arg14[%c8_144, %c0_145], %282 {strides = array<i32>} : memref<16x32xf32, #tpu.memory_space<vmem>>, vector<8x32xf32>,
    %c0_146 = arith.constant 0 : index
    %c0_147 = arith.constant 0 : index
    %284 = vector.load %arg14[%c0_146, %c0_147] : memref<16x32xf32, #tpu.memory_space<vmem>>, vector<16x32xf32>
    %285 = arith.addf %0, %284 : vector<16x32xf32>
    %c0_148 = arith.constant 0 : index
    %c0_149 = arith.constant 0 : index
    %286 = vector.load %arg7[%c0_148, %c0_149] : memref<1x32xf32, #tpu.memory_space<vmem>>, vector<1x32xf32>
    %c0_150 = arith.constant 0 : index
    %c0_151 = arith.constant 0 : index
    %287 = vector.load %arg8[%c0_150, %c0_151] : memref<1x32xf32, #tpu.memory_space<vmem>>, vector<1x32xf32>
    %cst_152 = arith.constant dense<0.000000e+00> : vector<16xf32>
    %288 = vector.multi_reduction <add>, %285, %cst_152 [1] : vector<16x32xf32> to vector<16xf32>
    %289 = vector.shape_cast %288 : vector<16xf32> to vector<16x1xf32>
    %cst_153 = arith.constant 3.200000e+01 : f32
    %290 = vector.broadcast %cst_153 : f32 to vector<16x1xf32>
    %291 = arith.divf %289, %290 : vector<16x1xf32>
    %292 = vector.broadcast %291 : vector<16x1xf32> to vector<16x32xf32>
    %293 = arith.subf %285, %292 : vector<16x32xf32>
    %294 = arith.mulf %293, %293 : vector<16x32xf32>
    %cst_154 = arith.constant dense<0.000000e+00> : vector<16xf32>
    %295 = vector.multi_reduction <add>, %294, %cst_154 [1] : vector<16x32xf32> to vector<16xf32>
    %296 = vector.shape_cast %295 : vector<16xf32> to vector<16x1xf32>
    %cst_155 = arith.constant 3.200000e+01 : f32
    %297 = vector.broadcast %cst_155 : f32 to vector<16x1xf32>
    %298 = arith.divf %296, %297 : vector<16x1xf32>
    %299 = vector.broadcast %291 : vector<16x1xf32> to vector<16x32xf32>
    %300 = arith.subf %285, %299 : vector<16x32xf32>
    %cst_156 = arith.constant 9.99999974E-6 : f32
    %301 = vector.broadcast %cst_156 : f32 to vector<16x1xf32>
    %302 = arith.addf %298, %301 : vector<16x1xf32>
    %303 = math.rsqrt %302 : vector<16x1xf32>
    %304 = vector.broadcast %303 : vector<16x1xf32> to vector<16x32xf32>
    %305 = arith.mulf %300, %304 : vector<16x32xf32>
    %306 = vector.broadcast %286 : vector<1x32xf32> to vector<16x32xf32>
    %307 = arith.mulf %305, %306 : vector<16x32xf32>
    %308 = vector.broadcast %287 : vector<1x32xf32> to vector<16x32xf32>
    %309 = arith.addf %307, %308 : vector<16x32xf32>
    %310 = arith.truncf %309 : vector<16x32xf32> to vector<16x32xbf16>
    %c0_157 = arith.constant 0 : index
    %c0_158 = arith.constant 0 : index
    %311 = vector.load %arg9[%c0_157, %c0_158] : memref<32x32xbf16, #tpu.memory_space<vmem>>, vector<32x32xbf16>
    %cst_159 = arith.constant dense<0.000000e+00> : vector<16x32xf32>
    %312 = tpu.matmul %310, %311, %cst_159 {dimension_numbers = #tpu.dot_dimension_numbers<[1], [0], [0], [1], [0, 0, 1, 1], [], []>} : vector<16x32xbf16>, vector<32x32xbf16>, vector<16x32xf32> -> vector<16x32xf32>
    %cst_160 = arith.constant 0.000000e+00 : f32
    %313 = vector.broadcast %cst_160 : f32 to vector<16x32xf32>
    %314 = arith.maximumf %312, %313 : vector<16x32xf32>
    %315 = arith.truncf %314 : vector<16x32xf32> to vector<16x32xbf16>
    %c0_161 = arith.constant 0 : index
    %c0_162 = arith.constant 0 : index
    %316 = vector.load %arg10[%c0_161, %c0_162] : memref<32x32xbf16, #tpu.memory_space<vmem>>, vector<32x32xbf16>
    %cst_163 = arith.constant dense<0.000000e+00> : vector<16x32xf32>
    %317 = tpu.matmul %315, %316, %cst_163 {dimension_numbers = #tpu.dot_dimension_numbers<[1], [0], [0], [1], [0, 0, 1, 1], [], []>} : vector<16x32xbf16>, vector<32x32xbf16>, vector<16x32xf32> -> vector<16x32xf32>
    %318 = arith.addf %309, %317 : vector<16x32xf32>
    %c0_164 = arith.constant 0 : index
    %c0_165 = arith.constant 0 : index
    %319 = vector.load %arg11[%c0_164, %c0_165] : memref<1x32xf32, #tpu.memory_space<vmem>>, vector<1x32xf32>
    %c0_166 = arith.constant 0 : index
    %c0_167 = arith.constant 0 : index
    %320 = vector.load %arg12[%c0_166, %c0_167] : memref<1x32xf32, #tpu.memory_space<vmem>>, vector<1x32xf32>
    %cst_168 = arith.constant dense<0.000000e+00> : vector<16xf32>
    %321 = vector.multi_reduction <add>, %318, %cst_168 [1] : vector<16x32xf32> to vector<16xf32>
    %322 = vector.shape_cast %321 : vector<16xf32> to vector<16x1xf32>
    %cst_169 = arith.constant 3.200000e+01 : f32
    %323 = vector.broadcast %cst_169 : f32 to vector<16x1xf32>
    %324 = arith.divf %322, %323 : vector<16x1xf32>
    %325 = vector.broadcast %324 : vector<16x1xf32> to vector<16x32xf32>
    %326 = arith.subf %318, %325 : vector<16x32xf32>
    %327 = arith.mulf %326, %326 : vector<16x32xf32>
    %cst_170 = arith.constant dense<0.000000e+00> : vector<16xf32>
    %328 = vector.multi_reduction <add>, %327, %cst_170 [1] : vector<16x32xf32> to vector<16xf32>
    %329 = vector.shape_cast %328 : vector<16xf32> to vector<16x1xf32>
    %cst_171 = arith.constant 3.200000e+01 : f32
    %330 = vector.broadcast %cst_171 : f32 to vector<16x1xf32>
    %331 = arith.divf %329, %330 : vector<16x1xf32>
    %332 = vector.broadcast %324 : vector<16x1xf32> to vector<16x32xf32>
    %333 = arith.subf %318, %332 : vector<16x32xf32>
    %cst_172 = arith.constant 9.99999974E-6 : f32
    %334 = vector.broadcast %cst_172 : f32 to vector<16x1xf32>
    %335 = arith.addf %331, %334 : vector<16x1xf32>
    %336 = math.rsqrt %335 : vector<16x1xf32>
    %337 = vector.broadcast %336 : vector<16x1xf32> to vector<16x32xf32>
    %338 = arith.mulf %333, %337 : vector<16x32xf32>
    %339 = vector.broadcast %319 : vector<1x32xf32> to vector<16x32xf32>
    %340 = arith.mulf %338, %339 : vector<16x32xf32>
    %341 = vector.broadcast %320 : vector<1x32xf32> to vector<16x32xf32>
    %342 = arith.addf %340, %341 : vector<16x32xf32>
    %c0_173 = arith.constant 0 : index
    %c0_174 = arith.constant 0 : index
    %343 = vector.load %arg13[%c0_173, %c0_174] : memref<16x32xf32, #tpu.memory_space<vmem>>, vector<16x32xf32>
    tpu.vector_store %arg13[%c0_173, %c0_174], %342 {strides = array<i32>} : memref<16x32xf32, #tpu.memory_space<vmem>>, vector<16x32xf32>,
    return
  }
  func.func @transform_0(%arg0: i32, %arg1: memref<2xi32, #tpu.memory_space<smem>>) -> (i32, i32) {
    %c0_i32 = arith.constant 0 : i32
    %c0_i32_0 = arith.constant 0 : i32
    return %arg0, %c0_i32 : i32, i32
  }
  func.func @transform_1(%arg0: i32, %arg1: memref<2xi32, #tpu.memory_space<smem>>) -> (i32, i32, i32) {
    %c0_i32 = arith.constant 0 : i32
    %c0_i32_0 = arith.constant 0 : i32
    %c0_i32_1 = arith.constant 0 : i32
    %c0_i32_2 = arith.constant 0 : i32
    return %c0_i32, %c0_i32_0, %c0_i32_1 : i32, i32, i32
  }
  func.func @transform_2(%arg0: i32, %arg1: memref<2xi32, #tpu.memory_space<smem>>) -> (i32, i32, i32) {
    %c0_i32 = arith.constant 0 : i32
    %c0_i32_0 = arith.constant 0 : i32
    %c0_i32_1 = arith.constant 0 : i32
    %c0_i32_2 = arith.constant 0 : i32
    return %c0_i32, %c0_i32_0, %c0_i32_1 : i32, i32, i32
  }
  func.func @transform_3(%arg0: i32, %arg1: memref<2xi32, #tpu.memory_space<smem>>) -> (i32, i32, i32) {
    %c0_i32 = arith.constant 0 : i32
    %c0_i32_0 = arith.constant 0 : i32
    %c0_i32_1 = arith.constant 0 : i32
    %c0_i32_2 = arith.constant 0 : i32
    return %c0_i32, %c0_i32_0, %c0_i32_1 : i32, i32, i32
  }
  func.func @transform_4(%arg0: i32, %arg1: memref<2xi32, #tpu.memory_space<smem>>) -> (i32, i32, i32) {
    %c0_i32 = arith.constant 0 : i32
    %c0_i32_0 = arith.constant 0 : i32
    %c0_i32_1 = arith.constant 0 : i32
    %c0_i32_2 = arith.constant 0 : i32
    return %c0_i32, %c0_i32_0, %c0_i32_1 : i32, i32, i32
  }
  func.func @transform_5(%arg0: i32, %arg1: memref<2xi32, #tpu.memory_space<smem>>) -> (i32, i32) {
    %c0_i32 = arith.constant 0 : i32
    %c0_i32_0 = arith.constant 0 : i32
    %c0_i32_1 = arith.constant 0 : i32
    return %c0_i32, %c0_i32_0 : i32, i32
  }
  func.func @transform_6(%arg0: i32, %arg1: memref<2xi32, #tpu.memory_space<smem>>) -> (i32, i32) {
    %c0_i32 = arith.constant 0 : i32
    %c0_i32_0 = arith.constant 0 : i32
    %c0_i32_1 = arith.constant 0 : i32
    return %c0_i32, %c0_i32_0 : i32, i32
  }
  func.func @transform_7(%arg0: i32, %arg1: memref<2xi32, #tpu.memory_space<smem>>) -> (i32, i32) {
    %c0_i32 = arith.constant 0 : i32
    %c0_i32_0 = arith.constant 0 : i32
    %c0_i32_1 = arith.constant 0 : i32
    return %c0_i32, %c0_i32_0 : i32, i32
  }
  func.func @transform_8(%arg0: i32, %arg1: memref<2xi32, #tpu.memory_space<smem>>) -> (i32, i32) {
    %c0_i32 = arith.constant 0 : i32
    %c0_i32_0 = arith.constant 0 : i32
    %c0_i32_1 = arith.constant 0 : i32
    return %c0_i32, %c0_i32_0 : i32, i32
  }
  func.func @transform_9(%arg0: i32, %arg1: memref<2xi32, #tpu.memory_space<smem>>) -> (i32, i32) {
    %c0_i32 = arith.constant 0 : i32
    %c0_i32_0 = arith.constant 0 : i32
    %c0_i32_1 = arith.constant 0 : i32
    return %c0_i32, %c0_i32_0 : i32, i32
  }
  func.func @transform_10(%arg0: i32, %arg1: memref<2xi32, #tpu.memory_space<smem>>) -> (i32, i32) {
    %c0_i32 = arith.constant 0 : i32
    %c0_i32_0 = arith.constant 0 : i32
    %c0_i32_1 = arith.constant 0 : i32
    return %c0_i32, %c0_i32_0 : i32, i32
  }
  func.func @transform_11(%arg0: i32, %arg1: memref<2xi32, #tpu.memory_space<smem>>) -> (i32, i32) {
    %c0_i32 = arith.constant 0 : i32
    %c0_i32_0 = arith.constant 0 : i32
    return %arg0, %c0_i32 : i32, i32
  }
}

</mosaic_0001>

<llo_original>
// kernel: tpu_custom_call.1
$region0: #{tpu_custom_call.1}
  #allocation0 [shape = 'u32[]', space=smem, size = 0x4, offset = 0x4, fixed_abs, tag = 'smem constant byte address 0x4 - core index']
  #allocation1 [shape = 'u32[72,128]{1,0:T(1,128)}', space=vmem, size = 0x9000, scoped, tag = 'internal scratch']
  #allocation2 [shape = 'f32[16,32]{1,0:T(8,128)}', space=vmem, size = 0x2000, scoped, tag = 'scratch operand']
  #allocation3 [shape = 's32[1]{0}', space=sflag, size = 0x4, scoped, tag = 'scoped memory for tpu_custom_call.1']
  #allocation4 [shape = 'u8[512]{0}', space=smem, size = 0x200, scoped, tag = 'prefetched SMEM operand 0']
  %s0 = inlined_call_operand.vmem [shape: s32[2], index: 0, kind: input, shape index: {}]
  %s1 = inlined_call_operand.vmem [shape: f32[16,32], index: 1, kind: input, shape index: {}]
  %s2 = inlined_call_operand.vmem [shape: bf16[4,32,8], index: 2, kind: input, shape index: {}]
  %s3 = inlined_call_operand.vmem [shape: bf16[4,32,8], index: 3, kind: input, shape index: {}]
  %s4 = inlined_call_operand.vmem [shape: bf16[4,32,8], index: 4, kind: input, shape index: {}]
  %s5 = inlined_call_operand.vmem [shape: bf16[4,8,32], index: 5, kind: input, shape index: {}]
  %s6 = inlined_call_operand.vmem [shape: f32[1,32], index: 6, kind: input, shape index: {}]
  %s7 = inlined_call_operand.vmem [shape: f32[1,32], index: 7, kind: input, shape index: {}]
  %s8 = inlined_call_operand.vmem [shape: bf16[32,32], index: 8, kind: input, shape index: {}]
  %s9 = inlined_call_operand.vmem [shape: bf16[32,32], index: 9, kind: input, shape index: {}]
  %s10 = inlined_call_operand.vmem [shape: f32[1,32], index: 10, kind: input, shape index: {}]
  %s11 = inlined_call_operand.vmem [shape: f32[1,32], index: 11, kind: input, shape index: {}]
  %s12 = inlined_call_operand.hbm [shape: f32[16,32], index: 12, kind: output, shape index: {}]
  %s13 = sld [smem:[#allocation0]]
  $region54: #{tpu_custom_call.1} parent=0
    _
  %s15 = ssub.s32 1, %s13
  %s16 = scalar_select 0, %s15, %s13
  %s18 = sshll.u32 %s0, 4
  %s19 = int_to_ptr.vmem [resolvable:$true] %s18
  %21 = dma.vmem_to_smem %s19, 16, [#allocation4], [#allocation3]
  %23 = dma.done [#allocation3], 16
  %24 = sfence
  $region1: #{tpu_custom_call.1} parent=0
    #allocation5 [shape = 'u8[8192]{0}', space=vmem, size = 0x2000, scoped, tag = 'output window, operand 0, single buffered']
    #allocation6 [shape = 's32[1]{0}', space=sflag, size = 0x4, scoped, tag = 'scoped memory for tpu_custom_call.1']
    %25 = vsyncpa [#allocation6], 0
    // Predicated region
    $region2: #{tpu_custom_call.1} parent=1 // pred_check
      _
    $region3: #{tpu_custom_call.1} parent=1 // pred_check_branch
      %27 = sbr.rel (0) target = $region5
    $region4: #{tpu_custom_call.1} parent=1 // pred_region
      _
    $region5: #{tpu_custom_call.1} parent=1 // pred_fallthru
      _
    // Predicated region
    $region6: #{tpu_custom_call.1} parent=1 // pred_check
      _
    $region7: #{tpu_custom_call.1} parent=1 // pred_check_branch
      %29 = sbr.rel (0) target = $region9
    $region8: #{tpu_custom_call.1} parent=1 // pred_region
      _
    $region9: #{tpu_custom_call.1} parent=1 // pred_fallthru
      _
    // Predicated region
    $region10: #{tpu_custom_call.1} parent=1 // pred_check
      _
    $region11: #{tpu_custom_call.1} parent=1 // pred_check_branch
      %31 = sbr.rel (0) target = $region13
    $region12: #{tpu_custom_call.1} parent=1 // pred_region
      _
    $region13: #{tpu_custom_call.1} parent=1 // pred_fallthru
      _
    // Predicated region
    $region14: #{tpu_custom_call.1} parent=1 // pred_check
      _
    $region15: #{tpu_custom_call.1} parent=1 // pred_check_branch
      %33 = sbr.rel (0) target = $region17
    $region16: #{tpu_custom_call.1} parent=1 // pred_region
      _
    $region17: #{tpu_custom_call.1} parent=1 // pred_fallthru
      _
    // Predicated region
    $region18: #{tpu_custom_call.1} parent=1 // pred_check
      _
    $region19: #{tpu_custom_call.1} parent=1 // pred_check_branch
      %35 = sbr.rel (0) target = $region21
    $region20: #{tpu_custom_call.1} parent=1 // pred_region
      _
    $region21: #{tpu_custom_call.1} parent=1 // pred_fallthru
      _
    // Predicated region
    $region22: #{tpu_custom_call.1} parent=1 // pred_check
      _
    $region23: #{tpu_custom_call.1} parent=1 // pred_check_branch
      %37 = sbr.rel (0) target = $region25
    $region24: #{tpu_custom_call.1} parent=1 // pred_region
      _
    $region25: #{tpu_custom_call.1} parent=1 // pred_fallthru
      _
    // Predicated region
    $region26: #{tpu_custom_call.1} parent=1 // pred_check
      _
    $region27: #{tpu_custom_call.1} parent=1 // pred_check_branch
      %39 = sbr.rel (0) target = $region29
    $region28: #{tpu_custom_call.1} parent=1 // pred_region
      _
    $region29: #{tpu_custom_call.1} parent=1 // pred_fallthru
      _
    // Predicated region
    $region30: #{tpu_custom_call.1} parent=1 // pred_check
      _
    $region31: #{tpu_custom_call.1} parent=1 // pred_check_branch
      %41 = sbr.rel (0) target = $region33
    $region32: #{tpu_custom_call.1} parent=1 // pred_region
      _
    $region33: #{tpu_custom_call.1} parent=1 // pred_fallthru
      _
    // Predicated region
    $region34: #{tpu_custom_call.1} parent=1 // pred_check
      _
    $region35: #{tpu_custom_call.1} parent=1 // pred_check_branch
      %43 = sbr.rel (0) target = $region37
    $region36: #{tpu_custom_call.1} parent=1 // pred_region
      _
    $region37: #{tpu_custom_call.1} parent=1 // pred_fallthru
      _
    // Predicated region
    $region38: #{tpu_custom_call.1} parent=1 // pred_check
      _
    $region39: #{tpu_custom_call.1} parent=1 // pred_check_branch
      %45 = sbr.rel (0) target = $region41
    $region40: #{tpu_custom_call.1} parent=1 // pred_region
      _
    $region41: #{tpu_custom_call.1} parent=1 // pred_fallthru
      _
    // Predicated region
    $region42: #{tpu_custom_call.1} parent=1 // pred_check
      _
    $region43: #{tpu_custom_call.1} parent=1 // pred_check_branch
      %47 = sbr.rel (0) target = $region45
    $region44: #{tpu_custom_call.1} parent=1 // pred_region
      _
    $region45: #{tpu_custom_call.1} parent=1 // pred_fallthru
      _
    %v49 = vld [vmem:[%s1] sm:$0xff]
    %v50 = vld [vmem:[%s1 + $0x8] sm:$0xff]
    %v51 = vpack.c.bf16 %v50, %v49
    %v52 = vlaneseq
    %v53 = vand.u32 %v52, 127
    %s54 = smul.u32 0, 2
    %s55 = sld [smem:[#allocation4 + %s54]]
    %v56 = vstv %s55
    %vm57 = vcmp.ge.s32.totalorder %v53, %v56
    %v58 = vsel %vm57, -1e+30, 0.0
    %s59 = sadd.s32 %s54, 1
    %s60 = sld [smem:[#allocation4 + %s59]]
    %v61 = vstv %s60
    %vm62 = vcmp.ge.s32.totalorder %v53, %v61
    %v63 = vsel %vm62, -1e+30, 0.0
    %vm64 = vcmask 261120
    %65 = vst.msk [vmem:[#allocation2] sm:$0xff] %vm64, 0.0
    %66 = vst.msk [vmem:[#allocation2 + $0x8] sm:$0xff] %vm64, 0.0
    %v67 = vld [vmem:[%s2] sm:$0xf]
    %v68 = vld [vmem:[%s2 + $0x4] sm:$0xf]
    %v69 = vld [vmem:[%s2 + $0x8] sm:$0xf]
    %v70 = vld [vmem:[%s2 + $0xc] sm:$0xf]
    %v71 = vld [vmem:[%s3] sm:$0xf]
    %v72 = vld [vmem:[%s3 + $0x4] sm:$0xf]
    %v73 = vld [vmem:[%s3 + $0x8] sm:$0xf]
    %v74 = vld [vmem:[%s3 + $0xc] sm:$0xf]
    %v75 = vld [vmem:[%s4] sm:$0xf]
    %v76 = vld [vmem:[%s4 + $0x4] sm:$0xf]
    %v77 = vld [vmem:[%s4 + $0x8] sm:$0xf]
    %v78 = vld [vmem:[%s4 + $0xc] sm:$0xf]
    %v79 = vld [vmem:[%s5] sm:$0xf]
    %v84 = vunpack.c.l.b16 %v67
    %v85 = vunpack.c.l.b16 %v68
    %v86 = vunpack.c.l.b16 %v69
    %v87 = vunpack.c.l.b16 %v70
    %v88 = vpack.c.b16 %v85, %v84
    %v89 = vpack.c.b16 %v87, %v86
    %v93 = vsel %vm64, %v51, 0
    %95 = vmatpush.bf16.msra.mxu0 0
    %96 = vmatpush.bf16.msra.mxu0 0
    %97 = vmatpush.bf16.msra.mxu0 0
    %98 = vmatpush.bf16.msra.mxu0 0
    %99 = vmatpush.bf16.msra.mxu0 0
    %100 = vmatpush.bf16.msra.mxu0 0
    %101 = vmatpush.bf16.msra.mxu0 %v89
    %102 = vmatpush.bf16.msra.mxu0 %v88
    %103 = vmatmul.bf16.gmra.mxu0 %v93
    %v104 = vpop.f32.mrf.mxu0
    %v105 = vadd.f32 0.0, %v104
    %v106 = vpop.f32.mrf.mxu0
    %v107 = vadd.f32 0.0, %v106
    %108 = vdwg.mxu0
    %v113 = vunpack.c.l.b16 %v71
    %v114 = vunpack.c.l.b16 %v72
    %v115 = vunpack.c.l.b16 %v73
    %v116 = vunpack.c.l.b16 %v74
    %v117 = vpack.c.b16 %v114, %v113
    %v118 = vpack.c.b16 %v116, %v115
    %121 = vmatpush.bf16.msra.mxu0 0
    %122 = vmatpush.bf16.msra.mxu0 0
    %123 = vmatpush.bf16.msra.mxu0 0
    %124 = vmatpush.bf16.msra.mxu0 0
    %125 = vmatpush.bf16.msra.mxu0 0
    %126 = vmatpush.bf16.msra.mxu0 0
    %127 = vmatpush.bf16.msra.mxu0 %v118
    %128 = vmatpush.bf16.msra.mxu0 %v117
    %129 = vmatmul.bf16.gmra.mxu0 %v93
    %v130 = vpop.f32.mrf.mxu0
    %v131 = vadd.f32 0.0, %v130
    %v132 = vpop.f32.mrf.mxu0
    %v133 = vadd.f32 0.0, %v132
    %134 = vdwg.mxu0
    %v139 = vunpack.c.l.b16 %v75
    %v140 = vunpack.c.l.b16 %v76
    %v141 = vunpack.c.l.b16 %v77
    %v142 = vunpack.c.l.b16 %v78
    %v143 = vpack.c.b16 %v140, %v139
    %v144 = vpack.c.b16 %v142, %v141
    %147 = vmatpush.bf16.msra.mxu0 0
    %148 = vmatpush.bf16.msra.mxu0 0
    %149 = vmatpush.bf16.msra.mxu0 0
    %150 = vmatpush.bf16.msra.mxu0 0
    %151 = vmatpush.bf16.msra.mxu0 0
    %152 = vmatpush.bf16.msra.mxu0 0
    %153 = vmatpush.bf16.msra.mxu0 %v144
    %154 = vmatpush.bf16.msra.mxu0 %v143
    %155 = vmatmul.bf16.gmra.mxu0 %v93
    %v156 = vpop.f32.mrf.mxu0
    %v157 = vadd.f32 0.0, %v156
    %v158 = vpop.f32.mrf.mxu0
    %v159 = vadd.f32 0.0, %v158
    %160 = vdwg.mxu0
    %v161 = vpack.c.bf16 %v105, %v105
    %v162 = vpack.c.bf16 %v131, %v131
    %v163 = vpack.c.bf16 %v157, %v157
    %vm164 = vcmask 64512
    %v166 = vsel %vm164, %v161, 0
    %v169 = vsel %vm164, %v162, 0
    %171 = vmatpush.bf16.xpose.msra.mxu0 0
    %172 = vmatpush.bf16.xpose.msra.mxu0 0
    %173 = vmatpush.bf16.xpose.msra.mxu0 0
    %174 = vmatpush.bf16.xpose.msra.mxu0 0
    %175 = vmatpush.bf16.xpose.msra.mxu0 0
    %176 = vmatpush.bf16.xpose.msra.mxu0 0
    %177 = vmatpush.bf16.xpose.msra.mxu0 0
    %178 = vmatpush.bf16.xpose.msra.mxu0 %v169
    %179 = vmatmul.bf16.gmra.mxu0 %v166
    %v180 = vpop.f32.mrf.mxu0
    %v181 = vadd.f32 0.0, %v180
    %v182 = vpop.f32.mrf.mxu0
    %183 = vdwg.mxu0
    %v184 = vmul.f32 %v181, 0.35355338
    %v185 = vadd.f32 %v184, %v58
    %v186 = vsel %vm164, %v185, -inf
    %187 = vmax.xlane.f32.xlu0 %v186
    %v188 = vpop.xlane.xlu0 %187
    %v189 = vsub.f32 %v185, %v188
    %v190 = vmul.f32 %v189, 1.442695
    %v191 = vpow.pop %v190
    %v192 = vsel %vm164, %v191, 0.0
    %193 = vadd.xlane.f32.xlu0 %v192
    %v194 = vpop.xlane.xlu0 %193
    %v195 = vrcp.pop %v194
    %v196 = vmul.f32 %v191, %v195
    %v197 = vpack.c.bf16 %v196, %v196
    %v199 = vsel %vm164, %v197, 0
    %vm201 = vcmask 1043456
    %v203 = vsel %vm201, %v163, 0
    %205 = vmatpush.bf16.msra.mxu0 0
    %206 = vmatpush.bf16.msra.mxu0 0
    %207 = vmatpush.bf16.msra.mxu0 0
    %208 = vmatpush.bf16.msra.mxu0 0
    %209 = vmatpush.bf16.msra.mxu0 0
    %210 = vmatpush.bf16.msra.mxu0 0
    %211 = vmatpush.bf16.msra.mxu0 0
    %212 = vmatpush.bf16.msra.mxu0 %v203
    %213 = vmatmul.bf16.gmra.mxu0 %v199
    %v214 = vpop.f32.mrf.mxu0
    %v215 = vadd.f32 0.0, %v214
    %v216 = vpop.f32.mrf.mxu0
    %217 = vdwg.mxu0
    %v218 = vpack.c.bf16 %v215, %v215
    %v220 = vsel %vm164, %v218, 0
    %v223 = vsel %vm201, %v79, 0
    %225 = vmatpush.bf16.msra.mxu0 0
    %226 = vmatpush.bf16.msra.mxu0 0
    %227 = vmatpush.bf16.msra.mxu0 0
    %228 = vmatpush.bf16.msra.mxu0 0
    %229 = vmatpush.bf16.msra.mxu0 0
    %230 = vmatpush.bf16.msra.mxu0 0
    %231 = vmatpush.bf16.msra.mxu0 0
    %232 = vmatpush.bf16.msra.mxu0 %v223
    %233 = vmatmul.bf16.gmra.mxu0 %v220
    %v234 = vpop.f32.mrf.mxu0
    %v235 = vadd.f32 0.0, %v234
    %v236 = vpop.f32.mrf.mxu0
    %237 = vdwg.mxu0
    %v238 = vld [vmem:[#allocation2] sm:$0xff]
    %v239 = vadd.f32 %v238, %v235
    %240 = vst.msk [vmem:[#allocation2] sm:$0xff] %vm64, %v239
    %v241 = vpack.c.bf16 %v107, %v107
    %v242 = vpack.c.bf16 %v133, %v133
    %v243 = vpack.c.bf16 %v159, %v159
    %v245 = vsel %vm164, %v241, 0
    %v248 = vsel %vm164, %v242, 0
    %250 = vmatpush.bf16.xpose.msra.mxu0 0
    %251 = vmatpush.bf16.xpose.msra.mxu0 0
    %252 = vmatpush.bf16.xpose.msra.mxu0 0
    %253 = vmatpush.bf16.xpose.msra.mxu0 0
    %254 = vmatpush.bf16.xpose.msra.mxu0 0
    %255 = vmatpush.bf16.xpose.msra.mxu0 0
    %256 = vmatpush.bf16.xpose.msra.mxu0 0
    %257 = vmatpush.bf16.xpose.msra.mxu0 %v248
    %258 = vmatmul.bf16.gmra.mxu0 %v245
    %v259 = vpop.f32.mrf.mxu0
    %v260 = vadd.f32 0.0, %v259
    %v261 = vpop.f32.mrf.mxu0
    %262 = vdwg.mxu0
    %v263 = vmul.f32 %v260, 0.35355338
    %v264 = vadd.f32 %v263, %v63
    %v265 = vsel %vm164, %v264, -inf
    %266 = vmax.xlane.f32.xlu0 %v265
    %v267 = vpop.xlane.xlu0 %266
    %v268 = vsub.f32 %v264, %v267
    %v269 = vmul.f32 %v268, 1.442695
    %v270 = vpow.pop %v269
    %v271 = vsel %vm164, %v270, 0.0
    %272 = vadd.xlane.f32.xlu0 %v271
    %v273 = vpop.xlane.xlu0 %272
    %v274 = vrcp.pop %v273
    %v275 = vmul.f32 %v270, %v274
    %v276 = vpack.c.bf16 %v275, %v275
    %v278 = vsel %vm164, %v276, 0
    %v281 = vsel %vm201, %v243, 0
    %283 = vmatpush.bf16.msra.mxu0 0
    %284 = vmatpush.bf16.msra.mxu0 0
    %285 = vmatpush.bf16.msra.mxu0 0
    %286 = vmatpush.bf16.msra.mxu0 0
    %287 = vmatpush.bf16.msra.mxu0 0
    %288 = vmatpush.bf16.msra.mxu0 0
    %289 = vmatpush.bf16.msra.mxu0 0
    %290 = vmatpush.bf16.msra.mxu0 %v281
    %291 = vmatmul.bf16.gmra.mxu0 %v278
    %v292 = vpop.f32.mrf.mxu0
    %v293 = vadd.f32 0.0, %v292
    %v294 = vpop.f32.mrf.mxu0
    %295 = vdwg.mxu0
    %v296 = vpack.c.bf16 %v293, %v293
    %v298 = vsel %vm164, %v296, 0
    %300 = vmatpush.bf16.msra.mxu0 0
    %301 = vmatpush.bf16.msra.mxu0 0
    %302 = vmatpush.bf16.msra.mxu0 0
    %303 = vmatpush.bf16.msra.mxu0 0
    %304 = vmatpush.bf16.msra.mxu0 0
    %305 = vmatpush.bf16.msra.mxu0 0
    %306 = vmatpush.bf16.msra.mxu0 0
    %307 = vmatpush.bf16.msra.mxu0 %v223
    %308 = vmatmul.bf16.gmra.mxu0 %v298
    %v309 = vpop.f32.mrf.mxu0
    %v310 = vadd.f32 0.0, %v309
    %v311 = vpop.f32.mrf.mxu0
    %312 = vdwg.mxu0
    %v313 = vld [vmem:[#allocation2 + $0x8] sm:$0xff]
    %v314 = vadd.f32 %v313, %v310
    %315 = vst.msk [vmem:[#allocation2 + $0x8] sm:$0xff] %vm64, %v314
    %s316 = scalar_lea.vmem %s2, 16
    %v317 = vld [vmem:[%s316] sm:$0xf]
    %v318 = vld [vmem:[%s316 + $0x4] sm:$0xf]
    %v319 = vld [vmem:[%s316 + $0x8] sm:$0xf]
    %v320 = vld [vmem:[%s316 + $0xc] sm:$0xf]
    %s321 = scalar_lea.vmem %s3, 16
    %v322 = vld [vmem:[%s321] sm:$0xf]
    %v323 = vld [vmem:[%s321 + $0x4] sm:$0xf]
    %v324 = vld [vmem:[%s321 + $0x8] sm:$0xf]
    %v325 = vld [vmem:[%s321 + $0xc] sm:$0xf]
    %s326 = scalar_lea.vmem %s4, 16
    %v327 = vld [vmem:[%s326] sm:$0xf]
    %v328 = vld [vmem:[%s326 + $0x4] sm:$0xf]
    %v329 = vld [vmem:[%s326 + $0x8] sm:$0xf]
    %v330 = vld [vmem:[%s326 + $0xc] sm:$0xf]
    %s331 = scalar_lea.vmem %s5, 4
    %v332 = vld [vmem:[%s331] sm:$0xf]
    %v337 = vunpack.c.l.b16 %v317
    %v338 = vunpack.c.l.b16 %v318
    %v339 = vunpack.c.l.b16 %v319
    %v340 = vunpack.c.l.b16 %v320
    %v341 = vpack.c.b16 %v338, %v337
    %v342 = vpack.c.b16 %v340, %v339
    %345 = vmatpush.bf16.msra.mxu0 0
    %346 = vmatpush.bf16.msra.mxu0 0
    %347 = vmatpush.bf16.msra.mxu0 0
    %348 = vmatpush.bf16.msra.mxu0 0
    %349 = vmatpush.bf16.msra.mxu0 0
    %350 = vmatpush.bf16.msra.mxu0 0
    %351 = vmatpush.bf16.msra.mxu0 %v342
    %352 = vmatpush.bf16.msra.mxu0 %v341
    %353 = vmatmul.bf16.gmra.mxu0 %v93
    %v354 = vpop.f32.mrf.mxu0
    %v355 = vadd.f32 0.0, %v354
    %v356 = vpop.f32.mrf.mxu0
    %v357 = vadd.f32 0.0, %v356
    %358 = vdwg.mxu0
    %v363 = vunpack.c.l.b16 %v322
    %v364 = vunpack.c.l.b16 %v323
    %v365 = vunpack.c.l.b16 %v324
    %v366 = vunpack.c.l.b16 %v325
    %v367 = vpack.c.b16 %v364, %v363
    %v368 = vpack.c.b16 %v366, %v365
    %371 = vmatpush.bf16.msra.mxu0 0
    %372 = vmatpush.bf16.msra.mxu0 0
    %373 = vmatpush.bf16.msra.mxu0 0
    %374 = vmatpush.bf16.msra.mxu0 0
    %375 = vmatpush.bf16.msra.mxu0 0
    %376 = vmatpush.bf16.msra.mxu0 0
    %377 = vmatpush.bf16.msra.mxu0 %v368
    %378 = vmatpush.bf16.msra.mxu0 %v367
    %379 = vmatmul.bf16.gmra.mxu0 %v93
    %v380 = vpop.f32.mrf.mxu0
    %v381 = vadd.f32 0.0, %v380
    %v382 = vpop.f32.mrf.mxu0
    %v383 = vadd.f32 0.0, %v382
    %384 = vdwg.mxu0
    %v389 = vunpack.c.l.b16 %v327
    %v390 = vunpack.c.l.b16 %v328
    %v391 = vunpack.c.l.b16 %v329
    %v392 = vunpack.c.l.b16 %v330
    %v393 = vpack.c.b16 %v390, %v389
    %v394 = vpack.c.b16 %v392, %v391
    %397 = vmatpush.bf16.msra.mxu0 0
    %398 = vmatpush.bf16.msra.mxu0 0
    %399 = vmatpush.bf16.msra.mxu0 0
    %400 = vmatpush.bf16.msra.mxu0 0
    %401 = vmatpush.bf16.msra.mxu0 0
    %402 = vmatpush.bf16.msra.mxu0 0
    %403 = vmatpush.bf16.msra.mxu0 %v394
    %404 = vmatpush.bf16.msra.mxu0 %v393
    %405 = vmatmul.bf16.gmra.mxu0 %v93
    %v406 = vpop.f32.mrf.mxu0
    %v407 = vadd.f32 0.0, %v406
    %v408 = vpop.f32.mrf.mxu0
    %v409 = vadd.f32 0.0, %v408
    %410 = vdwg.mxu0
    %v411 = vpack.c.bf16 %v355, %v355
    %v412 = vpack.c.bf16 %v381, %v381
    %v413 = vpack.c.bf16 %v407, %v407
    %v415 = vsel %vm164, %v411, 0
    %v418 = vsel %vm164, %v412, 0
    %420 = vmatpush.bf16.xpose.msra.mxu0 0
    %421 = vmatpush.bf16.xpose.msra.mxu0 0
    %422 = vmatpush.bf16.xpose.msra.mxu0 0
    %423 = vmatpush.bf16.xpose.msra.mxu0 0
    %424 = vmatpush.bf16.xpose.msra.mxu0 0
    %425 = vmatpush.bf16.xpose.msra.mxu0 0
    %426 = vmatpush.bf16.xpose.msra.mxu0 0
    %427 = vmatpush.bf16.xpose.msra.mxu0 %v418
    %428 = vmatmul.bf16.gmra.mxu0 %v415
    %v429 = vpop.f32.mrf.mxu0
    %v430 = vadd.f32 0.0, %v429
    %v431 = vpop.f32.mrf.mxu0
    %432 = vdwg.mxu0
    %v433 = vmul.f32 %v430, 0.35355338
    %v434 = vadd.f32 %v433, %v58
    %v435 = vsel %vm164, %v434, -inf
    %436 = vmax.xlane.f32.xlu0 %v435
    %v437 = vpop.xlane.xlu0 %436
    %v438 = vsub.f32 %v434, %v437
    %v439 = vmul.f32 %v438, 1.442695
    %v440 = vpow.pop %v439
    %v441 = vsel %vm164, %v440, 0.0
    %442 = vadd.xlane.f32.xlu0 %v441
    %v443 = vpop.xlane.xlu0 %442
    %v444 = vrcp.pop %v443
    %v445 = vmul.f32 %v440, %v444
    %v446 = vpack.c.bf16 %v445, %v445
    %v448 = vsel %vm164, %v446, 0
    %v451 = vsel %vm201, %v413, 0
    %453 = vmatpush.bf16.msra.mxu0 0
    %454 = vmatpush.bf16.msra.mxu0 0
    %455 = vmatpush.bf16.msra.mxu0 0
    %456 = vmatpush.bf16.msra.mxu0 0
    %457 = vmatpush.bf16.msra.mxu0 0
    %458 = vmatpush.bf16.msra.mxu0 0
    %459 = vmatpush.bf16.msra.mxu0 0
    %460 = vmatpush.bf16.msra.mxu0 %v451
    %461 = vmatmul.bf16.gmra.mxu0 %v448
    %v462 = vpop.f32.mrf.mxu0
    %v463 = vadd.f32 0.0, %v462
    %v464 = vpop.f32.mrf.mxu0
    %465 = vdwg.mxu0
    %v466 = vpack.c.bf16 %v463, %v463
    %v468 = vsel %vm164, %v466, 0
    %v471 = vsel %vm201, %v332, 0
    %473 = vmatpush.bf16.msra.mxu0 0
    %474 = vmatpush.bf16.msra.mxu0 0
    %475 = vmatpush.bf16.msra.mxu0 0
    %476 = vmatpush.bf16.msra.mxu0 0
    %477 = vmatpush.bf16.msra.mxu0 0
    %478 = vmatpush.bf16.msra.mxu0 0
    %479 = vmatpush.bf16.msra.mxu0 0
    %480 = vmatpush.bf16.msra.mxu0 %v471
    %481 = vmatmul.bf16.gmra.mxu0 %v468
    %v482 = vpop.f32.mrf.mxu0
    %v483 = vadd.f32 0.0, %v482
    %v484 = vpop.f32.mrf.mxu0
    %485 = vdwg.mxu0
    %v486 = vld [vmem:[#allocation2] sm:$0xff]
    %v487 = vadd.f32 %v486, %v483
    %488 = vst.msk [vmem:[#allocation2] sm:$0xff] %vm64, %v487
    %v489 = vpack.c.bf16 %v357, %v357
    %v490 = vpack.c.bf16 %v383, %v383
    %v491 = vpack.c.bf16 %v409, %v409
    %v493 = vsel %vm164, %v489, 0
    %v496 = vsel %vm164, %v490, 0
    %498 = vmatpush.bf16.xpose.msra.mxu0 0
    %499 = vmatpush.bf16.xpose.msra.mxu0 0
    %500 = vmatpush.bf16.xpose.msra.mxu0 0
    %501 = vmatpush.bf16.xpose.msra.mxu0 0
    %502 = vmatpush.bf16.xpose.msra.mxu0 0
    %503 = vmatpush.bf16.xpose.msra.mxu0 0
    %504 = vmatpush.bf16.xpose.msra.mxu0 0
    %505 = vmatpush.bf16.xpose.msra.mxu0 %v496
    %506 = vmatmul.bf16.gmra.mxu0 %v493
    %v507 = vpop.f32.mrf.mxu0
    %v508 = vadd.f32 0.0, %v507
    %v509 = vpop.f32.mrf.mxu0
    %510 = vdwg.mxu0
    %v511 = vmul.f32 %v508, 0.35355338
    %v512 = vadd.f32 %v511, %v63
    %v513 = vsel %vm164, %v512, -inf
    %514 = vmax.xlane.f32.xlu0 %v513
    %v515 = vpop.xlane.xlu0 %514
    %v516 = vsub.f32 %v512, %v515
    %v517 = vmul.f32 %v516, 1.442695
    %v518 = vpow.pop %v517
    %v519 = vsel %vm164, %v518, 0.0
    %520 = vadd.xlane.f32.xlu0 %v519
    %v521 = vpop.xlane.xlu0 %520
    %v522 = vrcp.pop %v521
    %v523 = vmul.f32 %v518, %v522
    %v524 = vpack.c.bf16 %v523, %v523
    %v526 = vsel %vm164, %v524, 0
    %v529 = vsel %vm201, %v491, 0
    %531 = vmatpush.bf16.msra.mxu0 0
    %532 = vmatpush.bf16.msra.mxu0 0
    %533 = vmatpush.bf16.msra.mxu0 0
    %534 = vmatpush.bf16.msra.mxu0 0
    %535 = vmatpush.bf16.msra.mxu0 0
    %536 = vmatpush.bf16.msra.mxu0 0
    %537 = vmatpush.bf16.msra.mxu0 0
    %538 = vmatpush.bf16.msra.mxu0 %v529
    %539 = vmatmul.bf16.gmra.mxu0 %v526
    %v540 = vpop.f32.mrf.mxu0
    %v541 = vadd.f32 0.0, %v540
    %v542 = vpop.f32.mrf.mxu0
    %543 = vdwg.mxu0
    %v544 = vpack.c.bf16 %v541, %v541
    %v546 = vsel %vm164, %v544, 0
    %548 = vmatpush.bf16.msra.mxu0 0
    %549 = vmatpush.bf16.msra.mxu0 0
    %550 = vmatpush.bf16.msra.mxu0 0
    %551 = vmatpush.bf16.msra.mxu0 0
    %552 = vmatpush.bf16.msra.mxu0 0
    %553 = vmatpush.bf16.msra.mxu0 0
    %554 = vmatpush.bf16.msra.mxu0 0
    %555 = vmatpush.bf16.msra.mxu0 %v471
    %556 = vmatmul.bf16.gmra.mxu0 %v546
    %v557 = vpop.f32.mrf.mxu0
    %v558 = vadd.f32 0.0, %v557
    %v559 = vpop.f32.mrf.mxu0
    %560 = vdwg.mxu0
    %v561 = vld [vmem:[#allocation2 + $0x8] sm:$0xff]
    %v562 = vadd.f32 %v561, %v558
    %563 = vst.msk [vmem:[#allocation2 + $0x8] sm:$0xff] %vm64, %v562
    %s564 = scalar_lea.vmem %s2, 32
    %v565 = vld [vmem:[%s564] sm:$0xf]
    %v566 = vld [vmem:[%s564 + $0x4] sm:$0xf]
    %v567 = vld [vmem:[%s564 + $0x8] sm:$0xf]
    %v568 = vld [vmem:[%s564 + $0xc] sm:$0xf]
    %s569 = scalar_lea.vmem %s3, 32
    %v570 = vld [vmem:[%s569] sm:$0xf]
    %v571 = vld [vmem:[%s569 + $0x4] sm:$0xf]
    %v572 = vld [vmem:[%s569 + $0x8] sm:$0xf]
    %v573 = vld [vmem:[%s569 + $0xc] sm:$0xf]
    %s574 = scalar_lea.vmem %s4, 32
    %v575 = vld [vmem:[%s574] sm:$0xf]
    %v576 = vld [vmem:[%s574 + $0x4] sm:$0xf]
    %v577 = vld [vmem:[%s574 + $0x8] sm:$0xf]
    %v578 = vld [vmem:[%s574 + $0xc] sm:$0xf]
    %s579 = scalar_lea.vmem %s5, 8
    %v580 = vld [vmem:[%s579] sm:$0xf]
    %v585 = vunpack.c.l.b16 %v565
    %v586 = vunpack.c.l.b16 %v566
    %v587 = vunpack.c.l.b16 %v567
    %v588 = vunpack.c.l.b16 %v568
    %v589 = vpack.c.b16 %v586, %v585
    %v590 = vpack.c.b16 %v588, %v587
    %593 = vmatpush.bf16.msra.mxu0 0
    %594 = vmatpush.bf16.msra.mxu0 0
    %595 = vmatpush.bf16.msra.mxu0 0
    %596 = vmatpush.bf16.msra.mxu0 0
    %597 = vmatpush.bf16.msra.mxu0 0
    %598 = vmatpush.bf16.msra.mxu0 0
    %599 = vmatpush.bf16.msra.mxu0 %v590
    %600 = vmatpush.bf16.msra.mxu0 %v589
    %601 = vmatmul.bf16.gmra.mxu0 %v93
    %v602 = vpop.f32.mrf.mxu0
    %v603 = vadd.f32 0.0, %v602
    %v604 = vpop.f32.mrf.mxu0
    %v605 = vadd.f32 0.0, %v604
    %606 = vdwg.mxu0
    %v611 = vunpack.c.l.b16 %v570
    %v612 = vunpack.c.l.b16 %v571
    %v613 = vunpack.c.l.b16 %v572
    %v614 = vunpack.c.l.b16 %v573
    %v615 = vpack.c.b16 %v612, %v611
    %v616 = vpack.c.b16 %v614, %v613
    %619 = vmatpush.bf16.msra.mxu0 0
    %620 = vmatpush.bf16.msra.mxu0 0
    %621 = vmatpush.bf16.msra.mxu0 0
    %622 = vmatpush.bf16.msra.mxu0 0
    %623 = vmatpush.bf16.msra.mxu0 0
    %624 = vmatpush.bf16.msra.mxu0 0
    %625 = vmatpush.bf16.msra.mxu0 %v616
    %626 = vmatpush.bf16.msra.mxu0 %v615
    %627 = vmatmul.bf16.gmra.mxu0 %v93
    %v628 = vpop.f32.mrf.mxu0
    %v629 = vadd.f32 0.0, %v628
    %v630 = vpop.f32.mrf.mxu0
    %v631 = vadd.f32 0.0, %v630
    %632 = vdwg.mxu0
    %v637 = vunpack.c.l.b16 %v575
    %v638 = vunpack.c.l.b16 %v576
    %v639 = vunpack.c.l.b16 %v577
    %v640 = vunpack.c.l.b16 %v578
    %v641 = vpack.c.b16 %v638, %v637
    %v642 = vpack.c.b16 %v640, %v639
    %645 = vmatpush.bf16.msra.mxu0 0
    %646 = vmatpush.bf16.msra.mxu0 0
    %647 = vmatpush.bf16.msra.mxu0 0
    %648 = vmatpush.bf16.msra.mxu0 0
    %649 = vmatpush.bf16.msra.mxu0 0
    %650 = vmatpush.bf16.msra.mxu0 0
    %651 = vmatpush.bf16.msra.mxu0 %v642
    %652 = vmatpush.bf16.msra.mxu0 %v641
    %653 = vmatmul.bf16.gmra.mxu0 %v93
    %v654 = vpop.f32.mrf.mxu0
    %v655 = vadd.f32 0.0, %v654
    %v656 = vpop.f32.mrf.mxu0
    %v657 = vadd.f32 0.0, %v656
    %658 = vdwg.mxu0
    %v659 = vpack.c.bf16 %v603, %v603
    %v660 = vpack.c.bf16 %v629, %v629
    %v661 = vpack.c.bf16 %v655, %v655
    %v663 = vsel %vm164, %v659, 0
    %v666 = vsel %vm164, %v660, 0
    %668 = vmatpush.bf16.xpose.msra.mxu0 0
    %669 = vmatpush.bf16.xpose.msra.mxu0 0
    %670 = vmatpush.bf16.xpose.msra.mxu0 0
    %671 = vmatpush.bf16.xpose.msra.mxu0 0
    %672 = vmatpush.bf16.xpose.msra.mxu0 0
    %673 = vmatpush.bf16.xpose.msra.mxu0 0
    %674 = vmatpush.bf16.xpose.msra.mxu0 0
    %675 = vmatpush.bf16.xpose.msra.mxu0 %v666
    %676 = vmatmul.bf16.gmra.mxu0 %v663
    %v677 = vpop.f32.mrf.mxu0
    %v678 = vadd.f32 0.0, %v677
    %v679 = vpop.f32.mrf.mxu0
    %680 = vdwg.mxu0
    %v681 = vmul.f32 %v678, 0.35355338
    %v682 = vadd.f32 %v681, %v58
    %v683 = vsel %vm164, %v682, -inf
    %684 = vmax.xlane.f32.xlu0 %v683
    %v685 = vpop.xlane.xlu0 %684
    %v686 = vsub.f32 %v682, %v685
    %v687 = vmul.f32 %v686, 1.442695
    %v688 = vpow.pop %v687
    %v689 = vsel %vm164, %v688, 0.0
    %690 = vadd.xlane.f32.xlu0 %v689
    %v691 = vpop.xlane.xlu0 %690
    %v692 = vrcp.pop %v691
    %v693 = vmul.f32 %v688, %v692
    %v694 = vpack.c.bf16 %v693, %v693
    %v696 = vsel %vm164, %v694, 0
    %v699 = vsel %vm201, %v661, 0
    %701 = vmatpush.bf16.msra.mxu0 0
    %702 = vmatpush.bf16.msra.mxu0 0
    %703 = vmatpush.bf16.msra.mxu0 0
    %704 = vmatpush.bf16.msra.mxu0 0
    %705 = vmatpush.bf16.msra.mxu0 0
    %706 = vmatpush.bf16.msra.mxu0 0
    %707 = vmatpush.bf16.msra.mxu0 0
    %708 = vmatpush.bf16.msra.mxu0 %v699
    %709 = vmatmul.bf16.gmra.mxu0 %v696
    %v710 = vpop.f32.mrf.mxu0
    %v711 = vadd.f32 0.0, %v710
    %v712 = vpop.f32.mrf.mxu0
    %713 = vdwg.mxu0
    %v714 = vpack.c.bf16 %v711, %v711
    %v716 = vsel %vm164, %v714, 0
    %v719 = vsel %vm201, %v580, 0
    %721 = vmatpush.bf16.msra.mxu0 0
    %722 = vmatpush.bf16.msra.mxu0 0
    %723 = vmatpush.bf16.msra.mxu0 0
    %724 = vmatpush.bf16.msra.mxu0 0
    %725 = vmatpush.bf16.msra.mxu0 0
    %726 = vmatpush.bf16.msra.mxu0 0
    %727 = vmatpush.bf16.msra.mxu0 0
    %728 = vmatpush.bf16.msra.mxu0 %v719
    %729 = vmatmul.bf16.gmra.mxu0 %v716
    %v730 = vpop.f32.mrf.mxu0
    %v731 = vadd.f32 0.0, %v730
    %v732 = vpop.f32.mrf.mxu0
    %733 = vdwg.mxu0
    %v734 = vld [vmem:[#allocation2] sm:$0xff]
    %v735 = vadd.f32 %v734, %v731
    %736 = vst.msk [vmem:[#allocation2] sm:$0xff] %vm64, %v735
    %v737 = vpack.c.bf16 %v605, %v605
    %v738 = vpack.c.bf16 %v631, %v631
    %v739 = vpack.c.bf16 %v657, %v657
    %v741 = vsel %vm164, %v737, 0
    %v744 = vsel %vm164, %v738, 0
    %746 = vmatpush.bf16.xpose.msra.mxu0 0
    %747 = vmatpush.bf16.xpose.msra.mxu0 0
    %748 = vmatpush.bf16.xpose.msra.mxu0 0
    %749 = vmatpush.bf16.xpose.msra.mxu0 0
    %750 = vmatpush.bf16.xpose.msra.mxu0 0
    %751 = vmatpush.bf16.xpose.msra.mxu0 0
    %752 = vmatpush.bf16.xpose.msra.mxu0 0
    %753 = vmatpush.bf16.xpose.msra.mxu0 %v744
    %754 = vmatmul.bf16.gmra.mxu0 %v741
    %v755 = vpop.f32.mrf.mxu0
    %v756 = vadd.f32 0.0, %v755
    %v757 = vpop.f32.mrf.mxu0
    %758 = vdwg.mxu0
    %v759 = vmul.f32 %v756, 0.35355338
    %v760 = vadd.f32 %v759, %v63
    %v761 = vsel %vm164, %v760, -inf
    %762 = vmax.xlane.f32.xlu0 %v761
    %v763 = vpop.xlane.xlu0 %762
    %v764 = vsub.f32 %v760, %v763
    %v765 = vmul.f32 %v764, 1.442695
    %v766 = vpow.pop %v765
    %v767 = vsel %vm164, %v766, 0.0
    %768 = vadd.xlane.f32.xlu0 %v767
    %v769 = vpop.xlane.xlu0 %768
    %v770 = vrcp.pop %v769
    %v771 = vmul.f32 %v766, %v770
    %v772 = vpack.c.bf16 %v771, %v771
    %v774 = vsel %vm164, %v772, 0
    %v777 = vsel %vm201, %v739, 0
    %779 = vmatpush.bf16.msra.mxu0 0
    %780 = vmatpush.bf16.msra.mxu0 0
    %781 = vmatpush.bf16.msra.mxu0 0
    %782 = vmatpush.bf16.msra.mxu0 0
    %783 = vmatpush.bf16.msra.mxu0 0
    %784 = vmatpush.bf16.msra.mxu0 0
    %785 = vmatpush.bf16.msra.mxu0 0
    %786 = vmatpush.bf16.msra.mxu0 %v777
    %787 = vmatmul.bf16.gmra.mxu0 %v774
    %v788 = vpop.f32.mrf.mxu0
    %v789 = vadd.f32 0.0, %v788
    %v790 = vpop.f32.mrf.mxu0
    %791 = vdwg.mxu0
    %v792 = vpack.c.bf16 %v789, %v789
    %v794 = vsel %vm164, %v792, 0
    %796 = vmatpush.bf16.msra.mxu0 0
    %797 = vmatpush.bf16.msra.mxu0 0
    %798 = vmatpush.bf16.msra.mxu0 0
    %799 = vmatpush.bf16.msra.mxu0 0
    %800 = vmatpush.bf16.msra.mxu0 0
    %801 = vmatpush.bf16.msra.mxu0 0
    %802 = vmatpush.bf16.msra.mxu0 0
    %803 = vmatpush.bf16.msra.mxu0 %v719
    %804 = vmatmul.bf16.gmra.mxu0 %v794
    %v805 = vpop.f32.mrf.mxu0
    %v806 = vadd.f32 0.0, %v805
    %v807 = vpop.f32.mrf.mxu0
    %808 = vdwg.mxu0
    %v809 = vld [vmem:[#allocation2 + $0x8] sm:$0xff]
    %v810 = vadd.f32 %v809, %v806
    %811 = vst.msk [vmem:[#allocation2 + $0x8] sm:$0xff] %vm64, %v810
    %s812 = scalar_lea.vmem %s2, 48
    %v813 = vld [vmem:[%s812] sm:$0xf]
    %v814 = vld [vmem:[%s812 + $0x4] sm:$0xf]
    %v815 = vld [vmem:[%s812 + $0x8] sm:$0xf]
    %v816 = vld [vmem:[%s812 + $0xc] sm:$0xf]
    %s817 = scalar_lea.vmem %s3, 48
    %v818 = vld [vmem:[%s817] sm:$0xf]
    %v819 = vld [vmem:[%s817 + $0x4] sm:$0xf]
    %v820 = vld [vmem:[%s817 + $0x8] sm:$0xf]
    %v821 = vld [vmem:[%s817 + $0xc] sm:$0xf]
    %s822 = scalar_lea.vmem %s4, 48
    %v823 = vld [vmem:[%s822] sm:$0xf]
    %v824 = vld [vmem:[%s822 + $0x4] sm:$0xf]
    %v825 = vld [vmem:[%s822 + $0x8] sm:$0xf]
    %v826 = vld [vmem:[%s822 + $0xc] sm:$0xf]
    %s827 = scalar_lea.vmem %s5, 12
    %v828 = vld [vmem:[%s827] sm:$0xf]
    %v833 = vunpack.c.l.b16 %v813
    %v834 = vunpack.c.l.b16 %v814
    %v835 = vunpack.c.l.b16 %v815
    %v836 = vunpack.c.l.b16 %v816
    %v837 = vpack.c.b16 %v834, %v833
    %v838 = vpack.c.b16 %v836, %v835
    %841 = vmatpush.bf16.msra.mxu0 0
    %842 = vmatpush.bf16.msra.mxu0 0
    %843 = vmatpush.bf16.msra.mxu0 0
    %844 = vmatpush.bf16.msra.mxu0 0
    %845 = vmatpush.bf16.msra.mxu0 0
    %846 = vmatpush.bf16.msra.mxu0 0
    %847 = vmatpush.bf16.msra.mxu0 %v838
    %848 = vmatpush.bf16.msra.mxu0 %v837
    %849 = vmatmul.bf16.gmra.mxu0 %v93
    %v850 = vpop.f32.mrf.mxu0
    %v851 = vadd.f32 0.0, %v850
    %v852 = vpop.f32.mrf.mxu0
    %v853 = vadd.f32 0.0, %v852
    %854 = vdwg.mxu0
    %v859 = vunpack.c.l.b16 %v818
    %v860 = vunpack.c.l.b16 %v819
    %v861 = vunpack.c.l.b16 %v820
    %v862 = vunpack.c.l.b16 %v821
    %v863 = vpack.c.b16 %v860, %v859
    %v864 = vpack.c.b16 %v862, %v861
    %867 = vmatpush.bf16.msra.mxu0 0
    %868 = vmatpush.bf16.msra.mxu0 0
    %869 = vmatpush.bf16.msra.mxu0 0
    %870 = vmatpush.bf16.msra.mxu0 0
    %871 = vmatpush.bf16.msra.mxu0 0
    %872 = vmatpush.bf16.msra.mxu0 0
    %873 = vmatpush.bf16.msra.mxu0 %v864
    %874 = vmatpush.bf16.msra.mxu0 %v863
    %875 = vmatmul.bf16.gmra.mxu0 %v93
    %v876 = vpop.f32.mrf.mxu0
    %v877 = vadd.f32 0.0, %v876
    %v878 = vpop.f32.mrf.mxu0
    %v879 = vadd.f32 0.0, %v878
    %880 = vdwg.mxu0
    %v885 = vunpack.c.l.b16 %v823
    %v886 = vunpack.c.l.b16 %v824
    %v887 = vunpack.c.l.b16 %v825
    %v888 = vunpack.c.l.b16 %v826
    %v889 = vpack.c.b16 %v886, %v885
    %v890 = vpack.c.b16 %v888, %v887
    %893 = vmatpush.bf16.msra.mxu0 0
    %894 = vmatpush.bf16.msra.mxu0 0
    %895 = vmatpush.bf16.msra.mxu0 0
    %896 = vmatpush.bf16.msra.mxu0 0
    %897 = vmatpush.bf16.msra.mxu0 0
    %898 = vmatpush.bf16.msra.mxu0 0
    %899 = vmatpush.bf16.msra.mxu0 %v890
    %900 = vmatpush.bf16.msra.mxu0 %v889
    %901 = vmatmul.bf16.gmra.mxu0 %v93
    %v902 = vpop.f32.mrf.mxu0
    %v903 = vadd.f32 0.0, %v902
    %v904 = vpop.f32.mrf.mxu0
    %v905 = vadd.f32 0.0, %v904
    %906 = vdwg.mxu0
    %v907 = vpack.c.bf16 %v851, %v851
    %v908 = vpack.c.bf16 %v877, %v877
    %v909 = vpack.c.bf16 %v903, %v903
    %v911 = vsel %vm164, %v907, 0
    %v914 = vsel %vm164, %v908, 0
    %916 = vmatpush.bf16.xpose.msra.mxu0 0
    %917 = vmatpush.bf16.xpose.msra.mxu0 0
    %918 = vmatpush.bf16.xpose.msra.mxu0 0
    %919 = vmatpush.bf16.xpose.msra.mxu0 0
    %920 = vmatpush.bf16.xpose.msra.mxu0 0
    %921 = vmatpush.bf16.xpose.msra.mxu0 0
    %922 = vmatpush.bf16.xpose.msra.mxu0 0
    %923 = vmatpush.bf16.xpose.msra.mxu0 %v914
    %924 = vmatmul.bf16.gmra.mxu0 %v911
    %v925 = vpop.f32.mrf.mxu0
    %v926 = vadd.f32 0.0, %v925
    %v927 = vpop.f32.mrf.mxu0
    %928 = vdwg.mxu0
    %v929 = vmul.f32 %v926, 0.35355338
    %v930 = vadd.f32 %v929, %v58
    %v931 = vsel %vm164, %v930, -inf
    %932 = vmax.xlane.f32.xlu0 %v931
    %v933 = vpop.xlane.xlu0 %932
    %v934 = vsub.f32 %v930, %v933
    %v935 = vmul.f32 %v934, 1.442695
    %v936 = vpow.pop %v935
    %v937 = vsel %vm164, %v936, 0.0
    %938 = vadd.xlane.f32.xlu0 %v937
    %v939 = vpop.xlane.xlu0 %938
    %v940 = vrcp.pop %v939
    %v941 = vmul.f32 %v936, %v940
    %v942 = vpack.c.bf16 %v941, %v941
    %v944 = vsel %vm164, %v942, 0
    %v947 = vsel %vm201, %v909, 0
    %949 = vmatpush.bf16.msra.mxu0 0
    %950 = vmatpush.bf16.msra.mxu0 0
    %951 = vmatpush.bf16.msra.mxu0 0
    %952 = vmatpush.bf16.msra.mxu0 0
    %953 = vmatpush.bf16.msra.mxu0 0
    %954 = vmatpush.bf16.msra.mxu0 0
    %955 = vmatpush.bf16.msra.mxu0 0
    %956 = vmatpush.bf16.msra.mxu0 %v947
    %957 = vmatmul.bf16.gmra.mxu0 %v944
    %v958 = vpop.f32.mrf.mxu0
    %v959 = vadd.f32 0.0, %v958
    %v960 = vpop.f32.mrf.mxu0
    %961 = vdwg.mxu0
    %v962 = vpack.c.bf16 %v959, %v959
    %v964 = vsel %vm164, %v962, 0
    %v967 = vsel %vm201, %v828, 0
    %969 = vmatpush.bf16.msra.mxu0 0
    %970 = vmatpush.bf16.msra.mxu0 0
    %971 = vmatpush.bf16.msra.mxu0 0
    %972 = vmatpush.bf16.msra.mxu0 0
    %973 = vmatpush.bf16.msra.mxu0 0
    %974 = vmatpush.bf16.msra.mxu0 0
    %975 = vmatpush.bf16.msra.mxu0 0
    %976 = vmatpush.bf16.msra.mxu0 %v967
    %977 = vmatmul.bf16.gmra.mxu0 %v964
    %v978 = vpop.f32.mrf.mxu0
    %v979 = vadd.f32 0.0, %v978
    %v980 = vpop.f32.mrf.mxu0
    %981 = vdwg.mxu0
    %v982 = vld [vmem:[#allocation2] sm:$0xff]
    %v983 = vadd.f32 %v982, %v979
    %984 = vst.msk [vmem:[#allocation2] sm:$0xff] %vm64, %v983
    %v985 = vpack.c.bf16 %v853, %v853
    %v986 = vpack.c.bf16 %v879, %v879
    %v987 = vpack.c.bf16 %v905, %v905
    %v989 = vsel %vm164, %v985, 0
    %v992 = vsel %vm164, %v986, 0
    %994 = vmatpush.bf16.xpose.msra.mxu0 0
    %995 = vmatpush.bf16.xpose.msra.mxu0 0
    %996 = vmatpush.bf16.xpose.msra.mxu0 0
    %997 = vmatpush.bf16.xpose.msra.mxu0 0
    %998 = vmatpush.bf16.xpose.msra.mxu0 0
    %999 = vmatpush.bf16.xpose.msra.mxu0 0
    %1000 = vmatpush.bf16.xpose.msra.mxu0 0
    %1001 = vmatpush.bf16.xpose.msra.mxu0 %v992
    %1002 = vmatmul.bf16.gmra.mxu0 %v989
    %v1003 = vpop.f32.mrf.mxu0
    %v1004 = vadd.f32 0.0, %v1003
    %v1005 = vpop.f32.mrf.mxu0
    %1006 = vdwg.mxu0
    %v1007 = vmul.f32 %v1004, 0.35355338
    %v1008 = vadd.f32 %v1007, %v63
    %v1009 = vsel %vm164, %v1008, -inf
    %1010 = vmax.xlane.f32.xlu0 %v1009
    %v1011 = vpop.xlane.xlu0 %1010
    %v1012 = vsub.f32 %v1008, %v1011
    %v1013 = vmul.f32 %v1012, 1.442695
    %v1014 = vpow.pop %v1013
    %v1015 = vsel %vm164, %v1014, 0.0
    %1016 = vadd.xlane.f32.xlu0 %v1015
    %v1017 = vpop.xlane.xlu0 %1016
    %v1018 = vrcp.pop %v1017
    %v1019 = vmul.f32 %v1014, %v1018
    %v1020 = vpack.c.bf16 %v1019, %v1019
    %v1022 = vsel %vm164, %v1020, 0
    %v1025 = vsel %vm201, %v987, 0
    %1027 = vmatpush.bf16.msra.mxu0 0
    %1028 = vmatpush.bf16.msra.mxu0 0
    %1029 = vmatpush.bf16.msra.mxu0 0
    %1030 = vmatpush.bf16.msra.mxu0 0
    %1031 = vmatpush.bf16.msra.mxu0 0
    %1032 = vmatpush.bf16.msra.mxu0 0
    %1033 = vmatpush.bf16.msra.mxu0 0
    %1034 = vmatpush.bf16.msra.mxu0 %v1025
    %1035 = vmatmul.bf16.gmra.mxu0 %v1022
    %v1036 = vpop.f32.mrf.mxu0
    %v1037 = vadd.f32 0.0, %v1036
    %v1038 = vpop.f32.mrf.mxu0
    %1039 = vdwg.mxu0
    %v1040 = vpack.c.bf16 %v1037, %v1037
    %v1042 = vsel %vm164, %v1040, 0
    %1044 = vmatpush.bf16.msra.mxu0 0
    %1045 = vmatpush.bf16.msra.mxu0 0
    %1046 = vmatpush.bf16.msra.mxu0 0
    %1047 = vmatpush.bf16.msra.mxu0 0
    %1048 = vmatpush.bf16.msra.mxu0 0
    %1049 = vmatpush.bf16.msra.mxu0 0
    %1050 = vmatpush.bf16.msra.mxu0 0
    %1051 = vmatpush.bf16.msra.mxu0 %v967
    %1052 = vmatmul.bf16.gmra.mxu0 %v1042
    %v1053 = vpop.f32.mrf.mxu0
    %v1054 = vadd.f32 0.0, %v1053
    %v1055 = vpop.f32.mrf.mxu0
    %1056 = vdwg.mxu0
    %v1057 = vld [vmem:[#allocation2 + $0x8] sm:$0xff]
    %v1058 = vadd.f32 %v1057, %v1054
    %1059 = vst.msk [vmem:[#allocation2 + $0x8] sm:$0xff] %vm64, %v1058
    %v1060 = vld [vmem:[#allocation2] sm:$0xff]
    %v1061 = vld [vmem:[#allocation2 + $0x8] sm:$0xff]
    %v1062 = vadd.f32 %v49, %v1060
    %v1063 = vadd.f32 %v50, %v1061
    %v1064 = vld [vmem:[%s6] sm:$0x1]
    %v1065 = vld [vmem:[%s7] sm:$0x1]
    %v1066 = vsel %vm64, %v1062, 0.0
    %1067 = vadd.xlane.f32.xlu0 %v1066
    %v1068 = vpop.xlane.xlu0 %1067
    %v1069 = vsel %vm64, %v1063, 0.0
    %1070 = vadd.xlane.f32.xlu0 %v1069
    %v1071 = vpop.xlane.xlu0 %1070
    %v1072 = vrcp.pop 32.0
    %v1073 = vmul.f32 32.0, %v1072
    %v1074 = vsub.f32 1.0, %v1073
    %v1075 = vmul.f32 %v1072, %v1074
    %v1076 = vadd.f32 %v1072, %v1075
    %vm1077 = vweird.f32 %v1072
    %v1078 = vsel %vm1077, %v1072, %v1076
    %v1079 = vmul.f32 %v1068, %v1078
    %v1080 = vmul.f32 %v1071, %v1078
    %v1081 = vsub.f32 %v1062, %v1079
    %v1082 = vsub.f32 %v1063, %v1080
    %v1083 = vmul.f32 %v1081, %v1081
    %v1084 = vmul.f32 %v1082, %v1082
    %v1085 = vsel %vm64, %v1083, 0.0
    %1086 = vadd.xlane.f32.xlu0 %v1085
    %v1087 = vpop.xlane.xlu0 %1086
    %v1088 = vsel %vm64, %v1084, 0.0
    %1089 = vadd.xlane.f32.xlu0 %v1088
    %v1090 = vpop.xlane.xlu0 %1089
    %v1091 = vmul.f32 %v1087, %v1078
    %v1092 = vmul.f32 %v1090, %v1078
    %v1093 = vadd.f32 %v1091, 1e-05
    %v1094 = vadd.f32 %v1092, 1e-05
    %v1095 = vrsqrt.pop %v1093
    %v1096 = vmul.f32 %v1095, %v1093
    %v1097 = vmul.f32 %v1096, %v1095
    %v1098 = vmul.f32 0.5, %v1097
    %v1099 = vsub.f32 1.5, %v1098
    %v1100 = vmul.f32 %v1095, %v1099
    %vm1101 = vweird.f32 %v1093
    %vm1102 = vweird.f32 %v1095
    %vm1103 = vmor %vm1101, %vm1102
    %v1104 = vsel %vm1103, %v1095, %v1100
    %v1105 = vrsqrt.pop %v1094
    %v1106 = vmul.f32 %v1105, %v1094
    %v1107 = vmul.f32 %v1106, %v1105
    %v1108 = vmul.f32 0.5, %v1107
    %v1109 = vsub.f32 1.5, %v1108
    %v1110 = vmul.f32 %v1105, %v1109
    %vm1111 = vweird.f32 %v1094
    %vm1112 = vweird.f32 %v1105
    %vm1113 = vmor %vm1111, %vm1112
    %v1114 = vsel %vm1113, %v1105, %v1110
    %v1115 = vmul.f32 %v1081, %v1104
    %v1116 = vmul.f32 %v1082, %v1114
    %v1118 = vperm.slane %v1064, 0
    %v1120 = vmul.f32 %v1115, %v1118
    %v1121 = vmul.f32 %v1116, %v1118
    %v1123 = vperm.slane %v1065, 0
    %v1125 = vadd.f32 %v1120, %v1123
    %v1126 = vadd.f32 %v1121, %v1123
    %v1127 = vpack.c.bf16 %v1126, %v1125
    %v1128 = vld [vmem:[%s8] sm:$0xf]
    %v1129 = vld [vmem:[%s8 + $0x4] sm:$0xf]
    %v1130 = vld [vmem:[%s8 + $0x8] sm:$0xf]
    %v1131 = vld [vmem:[%s8 + $0xc] sm:$0xf]
    %v1136 = vunpack.c.l.b16 %v1128
    %v1137 = vunpack.c.l.b16 %v1129
    %v1138 = vunpack.c.l.b16 %v1130
    %v1139 = vunpack.c.l.b16 %v1131
    %v1140 = vpack.c.b16 %v1137, %v1136
    %v1141 = vpack.c.b16 %v1139, %v1138
    %v1145 = vsel %vm64, %v1127, 0
    %1147 = vmatpush.bf16.msra.mxu0 0
    %1148 = vmatpush.bf16.msra.mxu0 0
    %1149 = vmatpush.bf16.msra.mxu0 0
    %1150 = vmatpush.bf16.msra.mxu0 0
    %1151 = vmatpush.bf16.msra.mxu0 0
    %1152 = vmatpush.bf16.msra.mxu0 0
    %1153 = vmatpush.bf16.msra.mxu0 %v1141
    %1154 = vmatpush.bf16.msra.mxu0 %v1140
    %1155 = vmatmul.bf16.gmra.mxu0 %v1145
    %v1156 = vpop.f32.mrf.mxu0
    %v1157 = vadd.f32 0.0, %v1156
    %v1158 = vpop.f32.mrf.mxu0
    %v1159 = vadd.f32 0.0, %v1158
    %1160 = vdwg.mxu0
    %v1161 = vmax.f32 %v1157, 0.0
    %v1162 = vmax.f32 %v1159, 0.0
    %v1163 = vpack.c.bf16 %v1162, %v1161
    %v1164 = vld [vmem:[%s9] sm:$0xf]
    %v1165 = vld [vmem:[%s9 + $0x4] sm:$0xf]
    %v1166 = vld [vmem:[%s9 + $0x8] sm:$0xf]
    %v1167 = vld [vmem:[%s9 + $0xc] sm:$0xf]
    %v1172 = vunpack.c.l.b16 %v1164
    %v1173 = vunpack.c.l.b16 %v1165
    %v1174 = vunpack.c.l.b16 %v1166
    %v1175 = vunpack.c.l.b16 %v1167
    %v1176 = vpack.c.b16 %v1173, %v1172
    %v1177 = vpack.c.b16 %v1175, %v1174
    %v1181 = vsel %vm64, %v1163, 0
    %1183 = vmatpush.bf16.msra.mxu0 0
    %1184 = vmatpush.bf16.msra.mxu0 0
    %1185 = vmatpush.bf16.msra.mxu0 0
    %1186 = vmatpush.bf16.msra.mxu0 0
    %1187 = vmatpush.bf16.msra.mxu0 0
    %1188 = vmatpush.bf16.msra.mxu0 0
    %1189 = vmatpush.bf16.msra.mxu0 %v1177
    %1190 = vmatpush.bf16.msra.mxu0 %v1176
    %1191 = vmatmul.bf16.gmra.mxu0 %v1181
    %v1192 = vpop.f32.mrf.mxu0
    %v1193 = vadd.f32 0.0, %v1192
    %v1194 = vpop.f32.mrf.mxu0
    %v1195 = vadd.f32 0.0, %v1194
    %1196 = vdwg.mxu0
    %v1197 = vadd.f32 %v1125, %v1193
    %v1198 = vadd.f32 %v1126, %v1195
    %v1199 = vld [vmem:[%s10] sm:$0x1]
    %v1200 = vld [vmem:[%s11] sm:$0x1]
    %v1201 = vsel %vm64, %v1197, 0.0
    %1202 = vadd.xlane.f32.xlu0 %v1201
    %v1203 = vpop.xlane.xlu0 %1202
    %v1204 = vsel %vm64, %v1198, 0.0
    %1205 = vadd.xlane.f32.xlu0 %v1204
    %v1206 = vpop.xlane.xlu0 %1205
    %v1207 = vmul.f32 %v1203, %v1078
    %v1208 = vmul.f32 %v1206, %v1078
    %v1209 = vsub.f32 %v1197, %v1207
    %v1210 = vsub.f32 %v1198, %v1208
    %v1211 = vmul.f32 %v1209, %v1209
    %v1212 = vmul.f32 %v1210, %v1210
    %v1213 = vsel %vm64, %v1211, 0.0
    %1214 = vadd.xlane.f32.xlu0 %v1213
    %v1215 = vpop.xlane.xlu0 %1214
    %v1216 = vsel %vm64, %v1212, 0.0
    %1217 = vadd.xlane.f32.xlu0 %v1216
    %v1218 = vpop.xlane.xlu0 %1217
    %v1219 = vmul.f32 %v1215, %v1078
    %v1220 = vmul.f32 %v1218, %v1078
    %v1221 = vadd.f32 %v1219, 1e-05
    %v1222 = vadd.f32 %v1220, 1e-05
    %v1223 = vrsqrt.pop %v1221
    %v1224 = vmul.f32 %v1223, %v1221
    %v1225 = vmul.f32 %v1224, %v1223
    %v1226 = vmul.f32 0.5, %v1225
    %v1227 = vsub.f32 1.5, %v1226
    %v1228 = vmul.f32 %v1223, %v1227
    %vm1229 = vweird.f32 %v1221
    %vm1230 = vweird.f32 %v1223
    %vm1231 = vmor %vm1229, %vm1230
    %v1232 = vsel %vm1231, %v1223, %v1228
    %v1233 = vrsqrt.pop %v1222
    %v1234 = vmul.f32 %v1233, %v1222
    %v1235 = vmul.f32 %v1234, %v1233
    %v1236 = vmul.f32 0.5, %v1235
    %v1237 = vsub.f32 1.5, %v1236
    %v1238 = vmul.f32 %v1233, %v1237
    %vm1239 = vweird.f32 %v1222
    %vm1240 = vweird.f32 %v1233
    %vm1241 = vmor %vm1239, %vm1240
    %v1242 = vsel %vm1241, %v1233, %v1238
    %v1243 = vmul.f32 %v1209, %v1232
    %v1244 = vmul.f32 %v1210, %v1242
    %v1246 = vperm.slane %v1199, 0
    %v1248 = vmul.f32 %v1243, %v1246
    %v1249 = vmul.f32 %v1244, %v1246
    %v1251 = vperm.slane %v1200, 0
    %v1253 = vadd.f32 %v1248, %v1251
    %v1254 = vadd.f32 %v1249, %v1251
    %1255 = vst.msk [vmem:[#allocation5] sm:$0xff] %vm64, %v1253
    %1256 = vst.msk [vmem:[#allocation5 + $0x8] sm:$0xff] %vm64, %v1254
    // Predicated region
    $region46: #{tpu_custom_call.1} parent=1 // pred_check
      _
    $region47: #{tpu_custom_call.1} parent=1 // pred_check_branch
      %1258 = sbr.rel (0) target = $region49
    $region48: #{tpu_custom_call.1} parent=1 // pred_region
      %1260 = vsyncadd [#allocation6], 0
      %s1261 = sshll.u32 [#allocation5], 4
      %s1262 = int_to_ptr.vmem [resolvable:$true] %s1261
      %s1263 = sshll.u32 %s12, 4
      %s1264 = int_to_ptr.hbm [resolvable:$true] %s1263
      %1269 = dma.vmem_to_hbm [thread:$0]  %s1262, 256, %s1264, [#allocation6], 128, 128, 8
    $region49: #{tpu_custom_call.1} parent=1 // pred_fallthru
      _
    // Predicated region
    $region50: #{tpu_custom_call.1} parent=1 // pred_check
      _
    $region51: #{tpu_custom_call.1} parent=1 // pred_check_branch
      %1271 = sbr.rel (0) target = $region53
    $region52: #{tpu_custom_call.1} parent=1 // pred_region
      %1273 = dma.done [#allocation6], 256
    $region53: #{tpu_custom_call.1} parent=1 // pred_fallthru
      _
    %1274 = vsyncpa [#allocation6], 1

</llo_original>
